<compile_context>
chip_gen: v7x
topology: tpu7x:2x2x1
jax: 0.10.0
libtpu: 0.0.40
codegen_flags: <defaults>
</compile_context>

<pallas_src>
import inspect

import jax
import jax.numpy as jnp
from jax.experimental import pallas as pl
from jax.experimental.pallas import tpu as pltpu

INPUT_DIM = 1280
H1 = 512
H2 = 256
OUT = 1
LN_EPS = 1e-5

# Single-buffer the resident operands when the installed Pallas exposes pipeline_mode.
_HAS_PIPELINE_MODE = (
    hasattr(pl, "Buffered")
    and "pipeline_mode" in inspect.signature(pl.BlockSpec).parameters
)


def _round_up(n, m):
    return ((n + m - 1) // m) * m


def _resident_spec(shape):
    """BlockSpec for an operand that stays in VMEM across the whole grid."""
    ndim = len(shape)
    kwargs = {}
    if _HAS_PIPELINE_MODE:
        kwargs["pipeline_mode"] = pl.Buffered(1)  # constant index_map -> one buffer suffices
    return pl.BlockSpec(shape, lambda i: (0,) * ndim, **kwargs)


def binding_predictor_kernel(x_ref, w1_ref, b1_ref, g_ref, beta_ref,
                             w2_ref, b2_ref, w3_ref, b3_ref, o_ref):
    # x tile: [TB, 1280]; cast to bf16 for the MXU (no-op if x already bf16).
    x = x_ref[...].astype(jnp.bfloat16)

    # Linear(1280 -> 512) + ReLU      (bf16 x bf16 -> f32 accumulate on the MXU)
    h = jnp.dot(x, w1_ref[...], preferred_element_type=jnp.float32)        # [TB, 512] f32
    h = jnp.maximum(h + b1_ref[...], 0.0)

    # LayerNorm(512): fused single-pass statistics (E[h], E[h^2]), biased variance,
    # f32 stats, elementwise affine, eps = 1e-5 (matches torch.nn.LayerNorm).
    mean = jnp.mean(h, axis=-1, keepdims=True)
    mean_sq = jnp.mean(h * h, axis=-1, keepdims=True)
    var = jnp.maximum(mean_sq - mean * mean, 0.0)
    h = (h - mean) * jax.lax.rsqrt(var + LN_EPS)
    h = h * g_ref[...] + beta_ref[...]

    # Linear(512 -> 256) + ReLU
    h = jnp.dot(h.astype(jnp.bfloat16), w2_ref[...],
                preferred_element_type=jnp.float32)                        # [TB, 256] f32
    h = jnp.maximum(h + b2_ref[...], 0.0)

    # Linear(256 -> 1) on the VPU (multiply + lane reduce, w3 is a [1, 256] row),
    # written as a lane-dense [1, TB] row so the output store is an unmasked vst.
    logits = jnp.sum(h * w3_ref[...], axis=-1)[None, :] + b3_ref[...]      # [1, TB]
    o_ref[...] = logits[None, :, :].astype(o_ref.dtype)                    # [1, 1, TB]


def prepare_kernel_params(params):
    """One-time conversion to kernel-ready params (bf16 matmul weights).

    Call once and reuse; casting per forward pays an extra HBM read/write pass
    over ~2.6 MB of weights before the kernel even starts.
    """
    w1, b1, gamma, beta, w2, b2, w3_row, b3 = params
    return (w1.astype(jnp.bfloat16), b1, gamma, beta,
            w2.astype(jnp.bfloat16), b2, w3_row, b3)


def binding_predictor_forward(x, kernel_params, *, block_b=512, vmem_limit_bytes=None):
    """x: [B, INPUT_DIM] float32 or bfloat16.  Returns [B, 1] float32 logits."""
    w1_bf, b1, gamma, beta, w2_bf, b2, w3_row, b3 = kernel_params
    B = x.shape[0]

    # Batch tile: multiple of 8 sublanes (16 for bf16 x, sublane packing), capped at
    # block_b.  Tile count chosen to minimize padding; prefer >= 2 tiles for large
    # batches so v7x megacore sharding ("parallel" axis) uses both TensorCores.
    mult = 16 if x.dtype == jnp.bfloat16 else 8
    tb_cap = max(mult, _round_up(min(block_b, B), mult))
    num_tiles = pl.cdiv(B, tb_cap)
    if num_tiles < 2 and B >= 256:
        num_tiles = 2
    TB = _round_up(pl.cdiv(B, num_tiles), mult)
    B_pad = num_tiles * TB
    if B_pad != B:
        x = jnp.pad(x, ((0, B_pad - B), (0, 0)))

    out = pl.pallas_call(
        binding_predictor_kernel,
        # Lane-dense output slab: one [1, TB] row per batch tile; reshaped back below.
        out_shape=jax.ShapeDtypeStruct((num_tiles, 1, TB), jnp.float32),
        grid=(num_tiles,),
        in_specs=[
            pl.BlockSpec((TB, INPUT_DIM), lambda i: (i, 0)),   # x (batch-tiled stream)
            _resident_spec((INPUT_DIM, H1)),                   # w1 (bf16, [in, out])
            _resident_spec((1, H1)),                           # b1
            _resident_spec((1, H1)),                           # LayerNorm gamma
            _resident_spec((1, H1)),                           # LayerNorm beta
            _resident_spec((H1, H2)),                          # w2 (bf16, [in, out])
            _resident_spec((1, H2)),                           # b2
            _resident_spec((1, H2)),                           # w3 as a [1, 256] row
            _resident_spec((1, OUT)),                          # b3
        ],
        out_specs=pl.BlockSpec((1, 1, TB), lambda i: (i, 0, 0)),
        compiler_params=pltpu.CompilerParams(
            dimension_semantics=("parallel",),                 # megacore sharding on v7x
            vmem_limit_bytes=vmem_limit_bytes),
    )(x, w1_bf, b1, gamma, beta, w2_bf, b2, w3_row, b3)

    return out.reshape(-1)[:B][:, None]


def init_params(key):
    """Deterministic synthetic parameters (shapes mirror the torch module, f32)."""
    ks = jax.random.split(key, 6)
    # Matmul weights stored as [in, out] ( == torch Linear.weight.T );
    # final layer stored as a [1, H2] row ( == torch Linear(256, 1).weight ).
    w1 = jax.random.normal(ks[0], (INPUT_DIM, H1), jnp.float32) * (1.0 / jnp.sqrt(INPUT_DIM))
    b1 = jax.random.normal(ks[1], (1, H1), jnp.float32) * 0.01
    gamma = jnp.ones((1, H1), jnp.float32)
    beta = jnp.zeros((1, H1), jnp.float32)
    w2 = jax.random.normal(ks[2], (H1, H2), jnp.float32) * (1.0 / jnp.sqrt(H1))
    b2 = jax.random.normal(ks[3], (1, H2), jnp.float32) * 0.01
    w3_row = jax.random.normal(ks[4], (1, H2), jnp.float32) * (1.0 / jnp.sqrt(H2))
    b3 = jax.random.normal(ks[5], (1, OUT), jnp.float32) * 0.01
    return (w1, b1, gamma, beta, w2, b2, w3_row, b3)


def reference_forward(x, params):
    """Pure-JAX reference mirroring the kernel's bf16-input / f32-accumulate numerics."""
    w1, b1, gamma, beta, w2, b2, w3_row, b3 = params
    f32 = lambda a: a.astype(jnp.bfloat16).astype(jnp.float32)
    h = jnp.maximum(f32(x) @ f32(w1) + b1, 0.0)
    mean = jnp.mean(h, axis=-1, keepdims=True)
    var = jnp.mean((h - mean) ** 2, axis=-1, keepdims=True)
    h = (h - mean) / jnp.sqrt(var + LN_EPS) * gamma + beta
    h = jnp.maximum(f32(h) @ f32(w2) + b2, 0.0)
    return jnp.sum(h * w3_row, axis=-1, keepdims=True) + b3


if __name__ == "__main__":
    key = jax.random.PRNGKey(0)
    k_x, k_p = jax.random.split(key)

    B = 8
    x = jax.random.normal(k_x, (B, INPUT_DIM), jnp.float32)
    params = init_params(k_p)
    kparams = prepare_kernel_params(params)   # one-time bf16 weight cast

    out = binding_predictor_forward(x, kparams)
    out = jax.block_until_ready(out)

    ref = reference_forward(x, params)
    assert out.shape == (B, OUT)
    # bf16 matmul inputs with f32 accumulation -> small drift vs a pure-f32 torch forward.
    assert jnp.allclose(out, ref, atol=2e-2, rtol=2e-2), "mismatch vs reference"

    print("KERNEL_OK")
</pallas_src>

<mosaic_0001>
module attributes {stable_mosaic.version = 11 : i64} {
  func.func @binding_predictor_kernel(%arg0: i32, %arg1: memref<8x1280xf32, #tpu.memory_space<vmem>>, %arg2: memref<1280x512xbf16, #tpu.memory_space<vmem>>, %arg3: memref<1x512xf32, #tpu.memory_space<vmem>>, %arg4: memref<1x512xf32, #tpu.memory_space<vmem>>, %arg5: memref<1x512xf32, #tpu.memory_space<vmem>>, %arg6: memref<512x256xbf16, #tpu.memory_space<vmem>>, %arg7: memref<1x256xf32, #tpu.memory_space<vmem>>, %arg8: memref<1x256xf32, #tpu.memory_space<vmem>>, %arg9: memref<1x1xf32, #tpu.memory_space<vmem>>, %arg10: memref<1x1x8xf32, #tpu.memory_space<vmem>>) attributes {dimension_semantics = [#tpu.dimension_semantics<parallel>], iteration_bounds = array<i64: 1>, scalar_prefetch = 0 : i64, scratch_operands = 0 : i64, tpu.core_type = #tpu.core_type<tc>, window_params = [{transform_indices = @transform_0, window_bounds = array<i64: 8, 1280>}, {pipeline_mode = #tpu.pipeline_mode<synchronous>, transform_indices = @transform_1, window_bounds = array<i64: 1280, 512>}, {pipeline_mode = #tpu.pipeline_mode<synchronous>, transform_indices = @transform_2, window_bounds = array<i64: 1, 512>}, {pipeline_mode = #tpu.pipeline_mode<synchronous>, transform_indices = @transform_3, window_bounds = array<i64: 1, 512>}, {pipeline_mode = #tpu.pipeline_mode<synchronous>, transform_indices = @transform_4, window_bounds = array<i64: 1, 512>}, {pipeline_mode = #tpu.pipeline_mode<synchronous>, transform_indices = @transform_5, window_bounds = array<i64: 512, 256>}, {pipeline_mode = #tpu.pipeline_mode<synchronous>, transform_indices = @transform_6, window_bounds = array<i64: 1, 256>}, {pipeline_mode = #tpu.pipeline_mode<synchronous>, transform_indices = @transform_7, window_bounds = array<i64: 1, 256>}, {pipeline_mode = #tpu.pipeline_mode<synchronous>, transform_indices = @transform_8, window_bounds = array<i64: 1, 1>}, {transform_indices = @transform_9, window_bounds = array<i64: 1, 1, 8>}]} {
    %c0 = arith.constant 0 : index
    %c0_0 = arith.constant 0 : index
    %0 = vector.load %arg1[%c0, %c0_0] : memref<8x1280xf32, #tpu.memory_space<vmem>>, vector<8x1280xf32>
    %1 = arith.truncf %0 : vector<8x1280xf32> to vector<8x1280xbf16>
    %c0_1 = arith.constant 0 : index
    %c0_2 = arith.constant 0 : index
    %2 = vector.load %arg2[%c0_1, %c0_2] : memref<1280x512xbf16, #tpu.memory_space<vmem>>, vector<1280x512xbf16>
    %cst = arith.constant dense<0.000000e+00> : vector<8x512xf32>
    %3 = tpu.matmul %1, %2, %cst {dimension_numbers = #tpu.dot_dimension_numbers<[1], [0], [0], [1], [0, 0, 1, 1], [], []>} : vector<8x1280xbf16>, vector<1280x512xbf16>, vector<8x512xf32> -> vector<8x512xf32>
    %c0_3 = arith.constant 0 : index
    %c0_4 = arith.constant 0 : index
    %4 = vector.load %arg3[%c0_3, %c0_4] : memref<1x512xf32, #tpu.memory_space<vmem>>, vector<1x512xf32>
    %5 = vector.broadcast %4 : vector<1x512xf32> to vector<8x512xf32>
    %6 = arith.addf %3, %5 : vector<8x512xf32>
    %cst_5 = arith.constant 0.000000e+00 : f32
    %7 = vector.broadcast %cst_5 : f32 to vector<8x512xf32>
    %8 = arith.maximumf %6, %7 : vector<8x512xf32>
    %cst_6 = arith.constant dense<0.000000e+00> : vector<8xf32>
    %9 = vector.multi_reduction <add>, %8, %cst_6 [1] : vector<8x512xf32> to vector<8xf32>
    %10 = vector.shape_cast %9 : vector<8xf32> to vector<8x1xf32>
    %cst_7 = arith.constant 5.120000e+02 : f32
    %11 = vector.broadcast %cst_7 : f32 to vector<8x1xf32>
    %12 = arith.divf %10, %11 : vector<8x1xf32>
    %13 = arith.mulf %8, %8 : vector<8x512xf32>
    %cst_8 = arith.constant dense<0.000000e+00> : vector<8xf32>
    %14 = vector.multi_reduction <add>, %13, %cst_8 [1] : vector<8x512xf32> to vector<8xf32>
    %15 = vector.shape_cast %14 : vector<8xf32> to vector<8x1xf32>
    %cst_9 = arith.constant 5.120000e+02 : f32
    %16 = vector.broadcast %cst_9 : f32 to vector<8x1xf32>
    %17 = arith.divf %15, %16 : vector<8x1xf32>
    %18 = arith.mulf %12, %12 : vector<8x1xf32>
    %19 = arith.subf %17, %18 : vector<8x1xf32>
    %cst_10 = arith.constant 0.000000e+00 : f32
    %20 = vector.broadcast %cst_10 : f32 to vector<8x1xf32>
    %21 = arith.maximumf %19, %20 : vector<8x1xf32>
    %22 = vector.broadcast %12 : vector<8x1xf32> to vector<8x512xf32>
    %23 = arith.subf %8, %22 : vector<8x512xf32>
    %cst_11 = arith.constant 9.99999974E-6 : f32
    %24 = vector.broadcast %cst_11 : f32 to vector<8x1xf32>
    %25 = arith.addf %21, %24 : vector<8x1xf32>
    %26 = math.rsqrt %25 : vector<8x1xf32>
    %27 = vector.broadcast %26 : vector<8x1xf32> to vector<8x512xf32>
    %28 = arith.mulf %23, %27 : vector<8x512xf32>
    %c0_12 = arith.constant 0 : index
    %c0_13 = arith.constant 0 : index
    %29 = vector.load %arg4[%c0_12, %c0_13] : memref<1x512xf32, #tpu.memory_space<vmem>>, vector<1x512xf32>
    %30 = vector.broadcast %29 : vector<1x512xf32> to vector<8x512xf32>
    %31 = arith.mulf %28, %30 : vector<8x512xf32>
    %c0_14 = arith.constant 0 : index
    %c0_15 = arith.constant 0 : index
    %32 = vector.load %arg5[%c0_14, %c0_15] : memref<1x512xf32, #tpu.memory_space<vmem>>, vector<1x512xf32>
    %33 = vector.broadcast %32 : vector<1x512xf32> to vector<8x512xf32>
    %34 = arith.addf %31, %33 : vector<8x512xf32>
    %35 = arith.truncf %34 : vector<8x512xf32> to vector<8x512xbf16>
    %c0_16 = arith.constant 0 : index
    %c0_17 = arith.constant 0 : index
    %36 = vector.load %arg6[%c0_16, %c0_17] : memref<512x256xbf16, #tpu.memory_space<vmem>>, vector<512x256xbf16>
    %cst_18 = arith.constant dense<0.000000e+00> : vector<8x256xf32>
    %37 = tpu.matmul %35, %36, %cst_18 {dimension_numbers = #tpu.dot_dimension_numbers<[1], [0], [0], [1], [0, 0, 1, 1], [], []>} : vector<8x512xbf16>, vector<512x256xbf16>, vector<8x256xf32> -> vector<8x256xf32>
    %c0_19 = arith.constant 0 : index
    %c0_20 = arith.constant 0 : index
    %38 = vector.load %arg7[%c0_19, %c0_20] : memref<1x256xf32, #tpu.memory_space<vmem>>, vector<1x256xf32>
    %39 = vector.broadcast %38 : vector<1x256xf32> to vector<8x256xf32>
    %40 = arith.addf %37, %39 : vector<8x256xf32>
    %cst_21 = arith.constant 0.000000e+00 : f32
    %41 = vector.broadcast %cst_21 : f32 to vector<8x256xf32>
    %42 = arith.maximumf %40, %41 : vector<8x256xf32>
    %c0_22 = arith.constant 0 : index
    %c0_23 = arith.constant 0 : index
    %43 = vector.load %arg8[%c0_22, %c0_23] : memref<1x256xf32, #tpu.memory_space<vmem>>, vector<1x256xf32>
    %44 = vector.broadcast %43 : vector<1x256xf32> to vector<8x256xf32>
    %45 = arith.mulf %42, %44 : vector<8x256xf32>
    %cst_24 = arith.constant dense<0.000000e+00> : vector<8xf32>
    %46 = vector.multi_reduction <add>, %45, %cst_24 [1] : vector<8x256xf32> to vector<8xf32>
    %47 = vector.shape_cast %46 : vector<8xf32> to vector<1x8xf32>
    %c0_25 = arith.constant 0 : index
    %c0_26 = arith.constant 0 : index
    %48 = vector.load %arg9[%c0_25, %c0_26] : memref<1x1xf32, #tpu.memory_space<vmem>>, vector<1x1xf32>
    %49 = vector.broadcast %48 : vector<1x1xf32> to vector<1x8xf32>
    %50 = arith.addf %47, %49 : vector<1x8xf32>
    %51 = vector.shape_cast %50 : vector<1x8xf32> to vector<1x1x8xf32>
    %c0_27 = arith.constant 0 : index
    %c0_28 = arith.constant 0 : index
    %c0_29 = arith.constant 0 : index
    %52 = vector.load %arg10[%c0_27, %c0_28, %c0_29] : memref<1x1x8xf32, #tpu.memory_space<vmem>>, vector<1x1x8xf32>
    tpu.vector_store %arg10[%c0_27, %c0_28, %c0_29], %51 {strides = array<i32>} : memref<1x1x8xf32, #tpu.memory_space<vmem>>, vector<1x1x8xf32>,
    return
  }
  func.func @transform_0(%arg0: i32) -> (i32, i32) {
    %c0_i32 = arith.constant 0 : i32
    %c0_i32_0 = arith.constant 0 : i32
    return %arg0, %c0_i32 : i32, i32
  }
  func.func @transform_1(%arg0: i32) -> (i32, i32) {
    %c0_i32 = arith.constant 0 : i32
    %c0_i32_0 = arith.constant 0 : i32
    %c0_i32_1 = arith.constant 0 : i32
    return %c0_i32, %c0_i32_0 : i32, i32
  }
  func.func @transform_2(%arg0: i32) -> (i32, i32) {
    %c0_i32 = arith.constant 0 : i32
    %c0_i32_0 = arith.constant 0 : i32
    %c0_i32_1 = arith.constant 0 : i32
    return %c0_i32, %c0_i32_0 : i32, i32
  }
  func.func @transform_3(%arg0: i32) -> (i32, i32) {
    %c0_i32 = arith.constant 0 : i32
    %c0_i32_0 = arith.constant 0 : i32
    %c0_i32_1 = arith.constant 0 : i32
    return %c0_i32, %c0_i32_0 : i32, i32
  }
  func.func @transform_4(%arg0: i32) -> (i32, i32) {
    %c0_i32 = arith.constant 0 : i32
    %c0_i32_0 = arith.constant 0 : i32
    %c0_i32_1 = arith.constant 0 : i32
    return %c0_i32, %c0_i32_0 : i32, i32
  }
  func.func @transform_5(%arg0: i32) -> (i32, i32) {
    %c0_i32 = arith.constant 0 : i32
    %c0_i32_0 = arith.constant 0 : i32
    %c0_i32_1 = arith.constant 0 : i32
    return %c0_i32, %c0_i32_0 : i32, i32
  }
  func.func @transform_6(%arg0: i32) -> (i32, i32) {
    %c0_i32 = arith.constant 0 : i32
    %c0_i32_0 = arith.constant 0 : i32
    %c0_i32_1 = arith.constant 0 : i32
    return %c0_i32, %c0_i32_0 : i32, i32
  }
  func.func @transform_7(%arg0: i32) -> (i32, i32) {
    %c0_i32 = arith.constant 0 : i32
    %c0_i32_0 = arith.constant 0 : i32
    %c0_i32_1 = arith.constant 0 : i32
    return %c0_i32, %c0_i32_0 : i32, i32
  }
  func.func @transform_8(%arg0: i32) -> (i32, i32) {
    %c0_i32 = arith.constant 0 : i32
    %c0_i32_0 = arith.constant 0 : i32
    %c0_i32_1 = arith.constant 0 : i32
    return %c0_i32, %c0_i32_0 : i32, i32
  }
  func.func @transform_9(%arg0: i32) -> (i32, i32, i32) {
    %c0_i32 = arith.constant 0 : i32
    %c0_i32_0 = arith.constant 0 : i32
    %c0_i32_1 = arith.constant 0 : i32
    return %arg0, %c0_i32, %c0_i32_0 : i32, i32, i32
  }
}

</mosaic_0001>

<llo_original>
// kernel: tpu_custom_call.1
$region0: #{tpu_custom_call.1}
  #allocation0 [shape = 'u32[]', space=smem, size = 0x4, offset = 0x4, fixed_abs, tag = 'smem constant byte address 0x4 - core index']
  #allocation1 [shape = 'u32[144,128]{1,0:T(1,128)}', space=vmem, size = 0x12000, scoped, tag = 'internal scratch']
  #allocation2 [shape = 'f32[1,1]{1,0:T(1,128)S(1)}', space=vmem, size = 0x200, scoped, tag = 'scoped memory for tpu_custom_call.1']
  %s0 = inlined_call_operand.hbm [shape: f32[8,1280], index: 0, kind: input, shape index: {}]
  %s1 = inlined_call_operand.hbm [shape: bf16[1280,512], index: 1, kind: input, shape index: {}]
  %s2 = inlined_call_operand.hbm [shape: f32[1,512], index: 2, kind: input, shape index: {}]
  %s3 = inlined_call_operand.hbm [shape: f32[1,512], index: 3, kind: input, shape index: {}]
  %s4 = inlined_call_operand.hbm [shape: f32[1,512], index: 4, kind: input, shape index: {}]
  %s5 = inlined_call_operand.hbm [shape: bf16[512,256], index: 5, kind: input, shape index: {}]
  %s6 = inlined_call_operand.hbm [shape: f32[1,256], index: 6, kind: input, shape index: {}]
  %s7 = inlined_call_operand.hbm [shape: f32[1,256], index: 7, kind: input, shape index: {}]
  %s8 = inlined_call_operand.<no memory space> [shape: f32[1,1], index: 8, kind: input, shape index: {}]
  %s9 = inlined_call_operand.hbm [shape: f32[1,1,8], index: 9, kind: output, shape index: {}]
  %s10 = sld [smem:[#allocation0]]
  $region78: #{tpu_custom_call.1} parent=0
    _
  %s12 = ssub.s32 1, %s10
  %s13 = scalar_select 0, %s12, %s10
  %v14 = vstv %s8
  %15 = vst [vmem:[#allocation2] sm:$0x1] %v14
  $region1: #{tpu_custom_call.1} parent=0
    #allocation3 [shape = 'u8[40960]{0}', space=vmem, size = 0xa000, scoped, tag = 'input window, operand 0, single buffered']
    #allocation4 [shape = 's32[1]{0}', space=sflag, size = 0x4, scoped, tag = 'scoped memory for tpu_custom_call.1']
    #allocation5 [shape = 's32[1]{0}', space=sflag, size = 0x4, scoped, tag = 'scoped memory for tpu_custom_call.1']
    #allocation6 [shape = 'u8[1310720]{0}', space=vmem, size = 0x140000, scoped, tag = 'input window, operand 1, single buffered']
    #allocation7 [shape = 's32[1]{0}', space=sflag, size = 0x4, scoped, tag = 'scoped memory for tpu_custom_call.1']
    #allocation8 [shape = 'u8[2048]{0}', space=vmem, size = 0x800, scoped, tag = 'input window, operand 2, single buffered']
    #allocation9 [shape = 'u8[2048]{0}', space=vmem, size = 0x800, scoped, tag = 'input window, operand 3, single buffered']
    #allocation10 [shape = 's32[1]{0}', space=sflag, size = 0x4, scoped, tag = 'scoped memory for tpu_custom_call.1']
    #allocation11 [shape = 'u8[2048]{0}', space=vmem, size = 0x800, scoped, tag = 'input window, operand 4, single buffered']
    #allocation12 [shape = 'u8[262144]{0}', space=vmem, size = 0x40000, scoped, tag = 'input window, operand 5, single buffered']
    #allocation13 [shape = 's32[1]{0}', space=sflag, size = 0x4, scoped, tag = 'scoped memory for tpu_custom_call.1']
    #allocation14 [shape = 'u8[1024]{0}', space=vmem, size = 0x400, scoped, tag = 'input window, operand 6, single buffered']
    #allocation15 [shape = 'u8[1024]{0}', space=vmem, size = 0x400, scoped, tag = 'input window, operand 7, single buffered']
    #allocation16 [shape = 's32[1]{0}', space=sflag, size = 0x4, scoped, tag = 'scoped memory for tpu_custom_call.1']
    #allocation17 [shape = 'u8[512]{0}', space=vmem, size = 0x400, scoped, tag = 'output window, operand 0, single buffered']
    %16 = vsyncpa [#allocation4], 0
    %17 = vsyncpa [#allocation7], 0
    %18 = vsyncpa [#allocation10], 0
    %19 = vsyncpa [#allocation13], 0
    %20 = vsyncpa [#allocation16], 0
    %21 = vsyncpa [#allocation5], 0
    // Predicated region
    $region2: #{tpu_custom_call.1} parent=1 // pred_check
      _
    $region3: #{tpu_custom_call.1} parent=1 // pred_check_branch
      %23 = sbr.rel (0) target = $region5
    $region4: #{tpu_custom_call.1} parent=1 // pred_region
      %s25 = ssub.s32 1280, 1280
      %26 = vsyncadd [#allocation4], %s25
      %s28 = sshll.u32 [#allocation3], 4
      %s29 = int_to_ptr.vmem [resolvable:$true] %s28
      %31 = dma.hbm_to_vmem [thread:$0]  %s0, 1280, %s29, [#allocation4]
    $region5: #{tpu_custom_call.1} parent=1 // pred_fallthru
      _
    // Predicated region
    $region6: #{tpu_custom_call.1} parent=1 // pred_check
      _
    $region7: #{tpu_custom_call.1} parent=1 // pred_check_branch
      %33 = sbr.rel (0) target = $region9
    $region8: #{tpu_custom_call.1} parent=1 // pred_region
      %s35 = ssub.s32 40960, 40960
      %36 = vsyncadd [#allocation7], %s35
      %s37 = sshll.u32 [#allocation6], 4
      %s38 = int_to_ptr.vmem [resolvable:$true] %s37
      %43 = dma.hbm_to_vmem [thread:$0]  %s1, 40960, %s38, [#allocation7], 256, 256, 16
    $region9: #{tpu_custom_call.1} parent=1 // pred_fallthru
      _
    // Predicated region
    $region10: #{tpu_custom_call.1} parent=1 // pred_check
      _
    $region11: #{tpu_custom_call.1} parent=1 // pred_check_branch
      %45 = sbr.rel (0) target = $region13
    $region12: #{tpu_custom_call.1} parent=1 // pred_region
      %s47 = ssub.s32 64, 64
      %48 = vsyncadd [#allocation7], %s47
      %s50 = sshll.u32 [#allocation8], 4
      %s51 = int_to_ptr.vmem [resolvable:$true] %s50
      %53 = dma.hbm_to_vmem [thread:$0]  %s2, 64, %s51, [#allocation7]
    $region13: #{tpu_custom_call.1} parent=1 // pred_fallthru
      _
    // Predicated region
    $region14: #{tpu_custom_call.1} parent=1 // pred_check
      _
    $region15: #{tpu_custom_call.1} parent=1 // pred_check_branch
      %55 = sbr.rel (0) target = $region17
    $region16: #{tpu_custom_call.1} parent=1 // pred_region
      %s57 = ssub.s32 64, 64
      %58 = vsyncadd [#allocation10], %s57
      %s60 = sshll.u32 [#allocation9], 4
      %s61 = int_to_ptr.vmem [resolvable:$true] %s60
      %63 = dma.hbm_to_vmem [thread:$0]  %s3, 64, %s61, [#allocation10]
    $region17: #{tpu_custom_call.1} parent=1 // pred_fallthru
      _
    // Predicated region
    $region18: #{tpu_custom_call.1} parent=1 // pred_check
      _
    $region19: #{tpu_custom_call.1} parent=1 // pred_check_branch
      %65 = sbr.rel (0) target = $region21
    $region20: #{tpu_custom_call.1} parent=1 // pred_region
      %s67 = ssub.s32 64, 64
      %68 = vsyncadd [#allocation10], %s67
      %s70 = sshll.u32 [#allocation11], 4
      %s71 = int_to_ptr.vmem [resolvable:$true] %s70
      %73 = dma.hbm_to_vmem [thread:$0]  %s4, 64, %s71, [#allocation10]
    $region21: #{tpu_custom_call.1} parent=1 // pred_fallthru
      _
    // Predicated region
    $region22: #{tpu_custom_call.1} parent=1 // pred_check
      _
    $region23: #{tpu_custom_call.1} parent=1 // pred_check_branch
      %75 = sbr.rel (0) target = $region25
    $region24: #{tpu_custom_call.1} parent=1 // pred_region
      %s77 = ssub.s32 8192, 8192
      %78 = vsyncadd [#allocation13], %s77
      %s79 = sshll.u32 [#allocation12], 4
      %s80 = int_to_ptr.vmem [resolvable:$true] %s79
      %85 = dma.hbm_to_vmem [thread:$0]  %s5, 8192, %s80, [#allocation13], 128, 128, 8
    $region25: #{tpu_custom_call.1} parent=1 // pred_fallthru
      _
    // Predicated region
    $region26: #{tpu_custom_call.1} parent=1 // pred_check
      _
    $region27: #{tpu_custom_call.1} parent=1 // pred_check_branch
      %87 = sbr.rel (0) target = $region29
    $region28: #{tpu_custom_call.1} parent=1 // pred_region
      %s89 = ssub.s32 32, 32
      %90 = vsyncadd [#allocation13], %s89
      %s92 = sshll.u32 [#allocation14], 4
      %s93 = int_to_ptr.vmem [resolvable:$true] %s92
      %95 = dma.hbm_to_vmem [thread:$0]  %s6, 32, %s93, [#allocation13]
    $region29: #{tpu_custom_call.1} parent=1 // pred_fallthru
      _
    // Predicated region
    $region30: #{tpu_custom_call.1} parent=1 // pred_check
      _
    $region31: #{tpu_custom_call.1} parent=1 // pred_check_branch
      %97 = sbr.rel (0) target = $region33
    $region32: #{tpu_custom_call.1} parent=1 // pred_region
      %s99 = ssub.s32 32, 32
      %100 = vsyncadd [#allocation16], %s99
      %s102 = sshll.u32 [#allocation15], 4
      %s103 = int_to_ptr.vmem [resolvable:$true] %s102
      %105 = dma.hbm_to_vmem [thread:$0]  %s7, 32, %s103, [#allocation16]
    $region33: #{tpu_custom_call.1} parent=1 // pred_fallthru
      _
    // Predicated region
    $region34: #{tpu_custom_call.1} parent=1 // pred_check
      _
    $region35: #{tpu_custom_call.1} parent=1 // pred_check_branch
      %107 = sbr.rel (0) target = $region37
    $region36: #{tpu_custom_call.1} parent=1 // pred_region
      _
    $region37: #{tpu_custom_call.1} parent=1 // pred_fallthru
      _
    // Predicated region
    $region38: #{tpu_custom_call.1} parent=1 // pred_check
      _
    $region39: #{tpu_custom_call.1} parent=1 // pred_check_branch
      %109 = sbr.rel (0) target = $region41
    $region40: #{tpu_custom_call.1} parent=1 // pred_region
      %110 = dma.done [#allocation4], 1280
    $region41: #{tpu_custom_call.1} parent=1 // pred_fallthru
      _
    // Predicated region
    $region42: #{tpu_custom_call.1} parent=1 // pred_check
      _
    $region43: #{tpu_custom_call.1} parent=1 // pred_check_branch
      %112 = sbr.rel (0) target = $region45
    $region44: #{tpu_custom_call.1} parent=1 // pred_region
      %113 = dma.done [#allocation7], 40960
    $region45: #{tpu_custom_call.1} parent=1 // pred_fallthru
      _
    // Predicated region
    $region46: #{tpu_custom_call.1} parent=1 // pred_check
      _
    $region47: #{tpu_custom_call.1} parent=1 // pred_check_branch
      %115 = sbr.rel (0) target = $region49
    $region48: #{tpu_custom_call.1} parent=1 // pred_region
      %116 = dma.done [#allocation7], 64
    $region49: #{tpu_custom_call.1} parent=1 // pred_fallthru
      _
    // Predicated region
    $region50: #{tpu_custom_call.1} parent=1 // pred_check
      _
    $region51: #{tpu_custom_call.1} parent=1 // pred_check_branch
      %118 = sbr.rel (0) target = $region53
    $region52: #{tpu_custom_call.1} parent=1 // pred_region
      %119 = dma.done [#allocation10], 64
    $region53: #{tpu_custom_call.1} parent=1 // pred_fallthru
      _
    // Predicated region
    $region54: #{tpu_custom_call.1} parent=1 // pred_check
      _
    $region55: #{tpu_custom_call.1} parent=1 // pred_check_branch
      %121 = sbr.rel (0) target = $region57
    $region56: #{tpu_custom_call.1} parent=1 // pred_region
      %122 = dma.done [#allocation10], 64
    $region57: #{tpu_custom_call.1} parent=1 // pred_fallthru
      _
    // Predicated region
    $region58: #{tpu_custom_call.1} parent=1 // pred_check
      _
    $region59: #{tpu_custom_call.1} parent=1 // pred_check_branch
      %124 = sbr.rel (0) target = $region61
    $region60: #{tpu_custom_call.1} parent=1 // pred_region
      %125 = dma.done [#allocation13], 8192
    $region61: #{tpu_custom_call.1} parent=1 // pred_fallthru
      _
    // Predicated region
    $region62: #{tpu_custom_call.1} parent=1 // pred_check
      _
    $region63: #{tpu_custom_call.1} parent=1 // pred_check_branch
      %127 = sbr.rel (0) target = $region65
    $region64: #{tpu_custom_call.1} parent=1 // pred_region
      %128 = dma.done [#allocation13], 32
    $region65: #{tpu_custom_call.1} parent=1 // pred_fallthru
      _
    // Predicated region
    $region66: #{tpu_custom_call.1} parent=1 // pred_check
      _
    $region67: #{tpu_custom_call.1} parent=1 // pred_check_branch
      %130 = sbr.rel (0) target = $region69
    $region68: #{tpu_custom_call.1} parent=1 // pred_region
      %131 = dma.done [#allocation16], 32
    $region69: #{tpu_custom_call.1} parent=1 // pred_fallthru
      _
    %v132 = vld [vmem:[#allocation3] sm:$0xff]
    %v133 = vld [vmem:[#allocation3 + $0x8] sm:$0xff]
    %v134 = vld [vmem:[#allocation3 + $0x10] sm:$0xff]
    %v135 = vld [vmem:[#allocation3 + $0x18] sm:$0xff]
    %v136 = vld [vmem:[#allocation3 + $0x20] sm:$0xff]
    %v137 = vld [vmem:[#allocation3 + $0x28] sm:$0xff]
    %v138 = vld [vmem:[#allocation3 + $0x30] sm:$0xff]
    %v139 = vld [vmem:[#allocation3 + $0x38] sm:$0xff]
    %v140 = vld [vmem:[#allocation3 + $0x40] sm:$0xff]
    %v141 = vld [vmem:[#allocation3 + $0x48] sm:$0xff]
    %v142 = vpack.c.bf16 %v132, %v132
    %v143 = vpack.c.bf16 %v133, %v133
    %v144 = vpack.c.bf16 %v134, %v134
    %v145 = vpack.c.bf16 %v135, %v135
    %v146 = vpack.c.bf16 %v136, %v136
    %v147 = vpack.c.bf16 %v137, %v137
    %v148 = vpack.c.bf16 %v138, %v138
    %v149 = vpack.c.bf16 %v139, %v139
    %v150 = vpack.c.bf16 %v140, %v140
    %v151 = vpack.c.bf16 %v141, %v141
    %v152 = vld [vmem:[#allocation6] sm:$0xff]
    %v153 = vld [vmem:[#allocation6 + $0x8] sm:$0xff]
    %v154 = vld [vmem:[#allocation6 + $0x10] sm:$0xff]
    %v155 = vld [vmem:[#allocation6 + $0x18] sm:$0xff]
    %v156 = vld [vmem:[#allocation6 + $0x20] sm:$0xff]
    %v157 = vld [vmem:[#allocation6 + $0x28] sm:$0xff]
    %v158 = vld [vmem:[#allocation6 + $0x30] sm:$0xff]
    %v159 = vld [vmem:[#allocation6 + $0x38] sm:$0xff]
    %v160 = vld [vmem:[#allocation6 + $0x40] sm:$0xff]
    %v161 = vld [vmem:[#allocation6 + $0x48] sm:$0xff]
    %v162 = vld [vmem:[#allocation6 + $0x50] sm:$0xff]
    %v163 = vld [vmem:[#allocation6 + $0x58] sm:$0xff]
    %v164 = vld [vmem:[#allocation6 + $0x60] sm:$0xff]
    %v165 = vld [vmem:[#allocation6 + $0x68] sm:$0xff]
    %v166 = vld [vmem:[#allocation6 + $0x70] sm:$0xff]
    %v167 = vld [vmem:[#allocation6 + $0x78] sm:$0xff]
    %v168 = vld [vmem:[#allocation6 + $0x80] sm:$0xff]
    %v169 = vld [vmem:[#allocation6 + $0x88] sm:$0xff]
    %v170 = vld [vmem:[#allocation6 + $0x90] sm:$0xff]
    %v171 = vld [vmem:[#allocation6 + $0x98] sm:$0xff]
    %v172 = vld [vmem:[#allocation6 + $0xa0] sm:$0xff]
    %v173 = vld [vmem:[#allocation6 + $0xa8] sm:$0xff]
    %v174 = vld [vmem:[#allocation6 + $0xb0] sm:$0xff]
    %v175 = vld [vmem:[#allocation6 + $0xb8] sm:$0xff]
    %v176 = vld [vmem:[#allocation6 + $0xc0] sm:$0xff]
    %v177 = vld [vmem:[#allocation6 + $0xc8] sm:$0xff]
    %v178 = vld [vmem:[#allocation6 + $0xd0] sm:$0xff]
    %v179 = vld [vmem:[#allocation6 + $0xd8] sm:$0xff]
    %v180 = vld [vmem:[#allocation6 + $0xe0] sm:$0xff]
    %v181 = vld [vmem:[#allocation6 + $0xe8] sm:$0xff]
    %v182 = vld [vmem:[#allocation6 + $0xf0] sm:$0xff]
    %v183 = vld [vmem:[#allocation6 + $0xf8] sm:$0xff]
    %v184 = vld [vmem:[#allocation6 + $0x100] sm:$0xff]
    %v185 = vld [vmem:[#allocation6 + $0x108] sm:$0xff]
    %v186 = vld [vmem:[#allocation6 + $0x110] sm:$0xff]
    %v187 = vld [vmem:[#allocation6 + $0x118] sm:$0xff]
    %v188 = vld [vmem:[#allocation6 + $0x120] sm:$0xff]
    %v189 = vld [vmem:[#allocation6 + $0x128] sm:$0xff]
    %v190 = vld [vmem:[#allocation6 + $0x130] sm:$0xff]
    %v191 = vld [vmem:[#allocation6 + $0x138] sm:$0xff]
    %v192 = vld [vmem:[#allocation6 + $0x140] sm:$0xff]
    %v193 = vld [vmem:[#allocation6 + $0x148] sm:$0xff]
    %v194 = vld [vmem:[#allocation6 + $0x150] sm:$0xff]
    %v195 = vld [vmem:[#allocation6 + $0x158] sm:$0xff]
    %v196 = vld [vmem:[#allocation6 + $0x160] sm:$0xff]
    %v197 = vld [vmem:[#allocation6 + $0x168] sm:$0xff]
    %v198 = vld [vmem:[#allocation6 + $0x170] sm:$0xff]
    %v199 = vld [vmem:[#allocation6 + $0x178] sm:$0xff]
    %v200 = vld [vmem:[#allocation6 + $0x180] sm:$0xff]
    %v201 = vld [vmem:[#allocation6 + $0x188] sm:$0xff]
    %v202 = vld [vmem:[#allocation6 + $0x190] sm:$0xff]
    %v203 = vld [vmem:[#allocation6 + $0x198] sm:$0xff]
    %v204 = vld [vmem:[#allocation6 + $0x1a0] sm:$0xff]
    %v205 = vld [vmem:[#allocation6 + $0x1a8] sm:$0xff]
    %v206 = vld [vmem:[#allocation6 + $0x1b0] sm:$0xff]
    %v207 = vld [vmem:[#allocation6 + $0x1b8] sm:$0xff]
    %v208 = vld [vmem:[#allocation6 + $0x1c0] sm:$0xff]
    %v209 = vld [vmem:[#allocation6 + $0x1c8] sm:$0xff]
    %v210 = vld [vmem:[#allocation6 + $0x1d0] sm:$0xff]
    %v211 = vld [vmem:[#allocation6 + $0x1d8] sm:$0xff]
    %v212 = vld [vmem:[#allocation6 + $0x1e0] sm:$0xff]
    %v213 = vld [vmem:[#allocation6 + $0x1e8] sm:$0xff]
    %v214 = vld [vmem:[#allocation6 + $0x1f0] sm:$0xff]
    %v215 = vld [vmem:[#allocation6 + $0x1f8] sm:$0xff]
    %v216 = vld [vmem:[#allocation6 + $0x200] sm:$0xff]
    %v217 = vld [vmem:[#allocation6 + $0x208] sm:$0xff]
    %v218 = vld [vmem:[#allocation6 + $0x210] sm:$0xff]
    %v219 = vld [vmem:[#allocation6 + $0x218] sm:$0xff]
    %v220 = vld [vmem:[#allocation6 + $0x220] sm:$0xff]
    %v221 = vld [vmem:[#allocation6 + $0x228] sm:$0xff]
    %v222 = vld [vmem:[#allocation6 + $0x230] sm:$0xff]
    %v223 = vld [vmem:[#allocation6 + $0x238] sm:$0xff]
    %v224 = vld [vmem:[#allocation6 + $0x240] sm:$0xff]
    %v225 = vld [vmem:[#allocation6 + $0x248] sm:$0xff]
    %v226 = vld [vmem:[#allocation6 + $0x250] sm:$0xff]
    %v227 = vld [vmem:[#allocation6 + $0x258] sm:$0xff]
    %v228 = vld [vmem:[#allocation6 + $0x260] sm:$0xff]
    %v229 = vld [vmem:[#allocation6 + $0x268] sm:$0xff]
    %v230 = vld [vmem:[#allocation6 + $0x270] sm:$0xff]
    %v231 = vld [vmem:[#allocation6 + $0x278] sm:$0xff]
    %v232 = vld [vmem:[#allocation6 + $0x280] sm:$0xff]
    %v233 = vld [vmem:[#allocation6 + $0x288] sm:$0xff]
    %v234 = vld [vmem:[#allocation6 + $0x290] sm:$0xff]
    %v235 = vld [vmem:[#allocation6 + $0x298] sm:$0xff]
    %v236 = vld [vmem:[#allocation6 + $0x2a0] sm:$0xff]
    %v237 = vld [vmem:[#allocation6 + $0x2a8] sm:$0xff]
    %v238 = vld [vmem:[#allocation6 + $0x2b0] sm:$0xff]
    %v239 = vld [vmem:[#allocation6 + $0x2b8] sm:$0xff]
    %v240 = vld [vmem:[#allocation6 + $0x2c0] sm:$0xff]
    %v241 = vld [vmem:[#allocation6 + $0x2c8] sm:$0xff]
    %v242 = vld [vmem:[#allocation6 + $0x2d0] sm:$0xff]
    %v243 = vld [vmem:[#allocation6 + $0x2d8] sm:$0xff]
    %v244 = vld [vmem:[#allocation6 + $0x2e0] sm:$0xff]
    %v245 = vld [vmem:[#allocation6 + $0x2e8] sm:$0xff]
    %v246 = vld [vmem:[#allocation6 + $0x2f0] sm:$0xff]
    %v247 = vld [vmem:[#allocation6 + $0x2f8] sm:$0xff]
    %v248 = vld [vmem:[#allocation6 + $0x300] sm:$0xff]
    %v249 = vld [vmem:[#allocation6 + $0x308] sm:$0xff]
    %v250 = vld [vmem:[#allocation6 + $0x310] sm:$0xff]
    %v251 = vld [vmem:[#allocation6 + $0x318] sm:$0xff]
    %v252 = vld [vmem:[#allocation6 + $0x320] sm:$0xff]
    %v253 = vld [vmem:[#allocation6 + $0x328] sm:$0xff]
    %v254 = vld [vmem:[#allocation6 + $0x330] sm:$0xff]
    %v255 = vld [vmem:[#allocation6 + $0x338] sm:$0xff]
    %v256 = vld [vmem:[#allocation6 + $0x340] sm:$0xff]
    %v257 = vld [vmem:[#allocation6 + $0x348] sm:$0xff]
    %v258 = vld [vmem:[#allocation6 + $0x350] sm:$0xff]
    %v259 = vld [vmem:[#allocation6 + $0x358] sm:$0xff]
    %v260 = vld [vmem:[#allocation6 + $0x360] sm:$0xff]
    %v261 = vld [vmem:[#allocation6 + $0x368] sm:$0xff]
    %v262 = vld [vmem:[#allocation6 + $0x370] sm:$0xff]
    %v263 = vld [vmem:[#allocation6 + $0x378] sm:$0xff]
    %v264 = vld [vmem:[#allocation6 + $0x380] sm:$0xff]
    %v265 = vld [vmem:[#allocation6 + $0x388] sm:$0xff]
    %v266 = vld [vmem:[#allocation6 + $0x390] sm:$0xff]
    %v267 = vld [vmem:[#allocation6 + $0x398] sm:$0xff]
    %v268 = vld [vmem:[#allocation6 + $0x3a0] sm:$0xff]
    %v269 = vld [vmem:[#allocation6 + $0x3a8] sm:$0xff]
    %v270 = vld [vmem:[#allocation6 + $0x3b0] sm:$0xff]
    %v271 = vld [vmem:[#allocation6 + $0x3b8] sm:$0xff]
    %v272 = vld [vmem:[#allocation6 + $0x3c0] sm:$0xff]
    %v273 = vld [vmem:[#allocation6 + $0x3c8] sm:$0xff]
    %v274 = vld [vmem:[#allocation6 + $0x3d0] sm:$0xff]
    %v275 = vld [vmem:[#allocation6 + $0x3d8] sm:$0xff]
    %v276 = vld [vmem:[#allocation6 + $0x3e0] sm:$0xff]
    %v277 = vld [vmem:[#allocation6 + $0x3e8] sm:$0xff]
    %v278 = vld [vmem:[#allocation6 + $0x3f0] sm:$0xff]
    %v279 = vld [vmem:[#allocation6 + $0x3f8] sm:$0xff]
    %v280 = vld [vmem:[#allocation6 + $0x400] sm:$0xff]
    %v281 = vld [vmem:[#allocation6 + $0x408] sm:$0xff]
    %v282 = vld [vmem:[#allocation6 + $0x410] sm:$0xff]
    %v283 = vld [vmem:[#allocation6 + $0x418] sm:$0xff]
    %v284 = vld [vmem:[#allocation6 + $0x420] sm:$0xff]
    %v285 = vld [vmem:[#allocation6 + $0x428] sm:$0xff]
    %v286 = vld [vmem:[#allocation6 + $0x430] sm:$0xff]
    %v287 = vld [vmem:[#allocation6 + $0x438] sm:$0xff]
    %v288 = vld [vmem:[#allocation6 + $0x440] sm:$0xff]
    %v289 = vld [vmem:[#allocation6 + $0x448] sm:$0xff]
    %v290 = vld [vmem:[#allocation6 + $0x450] sm:$0xff]
    %v291 = vld [vmem:[#allocation6 + $0x458] sm:$0xff]
    %v292 = vld [vmem:[#allocation6 + $0x460] sm:$0xff]
    %v293 = vld [vmem:[#allocation6 + $0x468] sm:$0xff]
    %v294 = vld [vmem:[#allocation6 + $0x470] sm:$0xff]
    %v295 = vld [vmem:[#allocation6 + $0x478] sm:$0xff]
    %v296 = vld [vmem:[#allocation6 + $0x480] sm:$0xff]
    %v297 = vld [vmem:[#allocation6 + $0x488] sm:$0xff]
    %v298 = vld [vmem:[#allocation6 + $0x490] sm:$0xff]
    %v299 = vld [vmem:[#allocation6 + $0x498] sm:$0xff]
    %v300 = vld [vmem:[#allocation6 + $0x4a0] sm:$0xff]
    %v301 = vld [vmem:[#allocation6 + $0x4a8] sm:$0xff]
    %v302 = vld [vmem:[#allocation6 + $0x4b0] sm:$0xff]
    %v303 = vld [vmem:[#allocation6 + $0x4b8] sm:$0xff]
    %v304 = vld [vmem:[#allocation6 + $0x4c0] sm:$0xff]
    %v305 = vld [vmem:[#allocation6 + $0x4c8] sm:$0xff]
    %v306 = vld [vmem:[#allocation6 + $0x4d0] sm:$0xff]
    %v307 = vld [vmem:[#allocation6 + $0x4d8] sm:$0xff]
    %v308 = vld [vmem:[#allocation6 + $0x4e0] sm:$0xff]
    %v309 = vld [vmem:[#allocation6 + $0x4e8] sm:$0xff]
    %v310 = vld [vmem:[#allocation6 + $0x4f0] sm:$0xff]
    %v311 = vld [vmem:[#allocation6 + $0x4f8] sm:$0xff]
    %v312 = vld [vmem:[#allocation6 + $0x500] sm:$0xff]
    %v313 = vld [vmem:[#allocation6 + $0x508] sm:$0xff]
    %v314 = vld [vmem:[#allocation6 + $0x510] sm:$0xff]
    %v315 = vld [vmem:[#allocation6 + $0x518] sm:$0xff]
    %v316 = vld [vmem:[#allocation6 + $0x520] sm:$0xff]
    %v317 = vld [vmem:[#allocation6 + $0x528] sm:$0xff]
    %v318 = vld [vmem:[#allocation6 + $0x530] sm:$0xff]
    %v319 = vld [vmem:[#allocation6 + $0x538] sm:$0xff]
    %v320 = vld [vmem:[#allocation6 + $0x540] sm:$0xff]
    %v321 = vld [vmem:[#allocation6 + $0x548] sm:$0xff]
    %v322 = vld [vmem:[#allocation6 + $0x550] sm:$0xff]
    %v323 = vld [vmem:[#allocation6 + $0x558] sm:$0xff]
    %v324 = vld [vmem:[#allocation6 + $0x560] sm:$0xff]
    %v325 = vld [vmem:[#allocation6 + $0x568] sm:$0xff]
    %v326 = vld [vmem:[#allocation6 + $0x570] sm:$0xff]
    %v327 = vld [vmem:[#allocation6 + $0x578] sm:$0xff]
    %v328 = vld [vmem:[#allocation6 + $0x580] sm:$0xff]
    %v329 = vld [vmem:[#allocation6 + $0x588] sm:$0xff]
    %v330 = vld [vmem:[#allocation6 + $0x590] sm:$0xff]
    %v331 = vld [vmem:[#allocation6 + $0x598] sm:$0xff]
    %v332 = vld [vmem:[#allocation6 + $0x5a0] sm:$0xff]
    %v333 = vld [vmem:[#allocation6 + $0x5a8] sm:$0xff]
    %v334 = vld [vmem:[#allocation6 + $0x5b0] sm:$0xff]
    %v335 = vld [vmem:[#allocation6 + $0x5b8] sm:$0xff]
    %v336 = vld [vmem:[#allocation6 + $0x5c0] sm:$0xff]
    %v337 = vld [vmem:[#allocation6 + $0x5c8] sm:$0xff]
    %v338 = vld [vmem:[#allocation6 + $0x5d0] sm:$0xff]
    %v339 = vld [vmem:[#allocation6 + $0x5d8] sm:$0xff]
    %v340 = vld [vmem:[#allocation6 + $0x5e0] sm:$0xff]
    %v341 = vld [vmem:[#allocation6 + $0x5e8] sm:$0xff]
    %v342 = vld [vmem:[#allocation6 + $0x5f0] sm:$0xff]
    %v343 = vld [vmem:[#allocation6 + $0x5f8] sm:$0xff]
    %v344 = vld [vmem:[#allocation6 + $0x600] sm:$0xff]
    %v345 = vld [vmem:[#allocation6 + $0x608] sm:$0xff]
    %v346 = vld [vmem:[#allocation6 + $0x610] sm:$0xff]
    %v347 = vld [vmem:[#allocation6 + $0x618] sm:$0xff]
    %v348 = vld [vmem:[#allocation6 + $0x620] sm:$0xff]
    %v349 = vld [vmem:[#allocation6 + $0x628] sm:$0xff]
    %v350 = vld [vmem:[#allocation6 + $0x630] sm:$0xff]
    %v351 = vld [vmem:[#allocation6 + $0x638] sm:$0xff]
    %v352 = vld [vmem:[#allocation6 + $0x640] sm:$0xff]
    %v353 = vld [vmem:[#allocation6 + $0x648] sm:$0xff]
    %v354 = vld [vmem:[#allocation6 + $0x650] sm:$0xff]
    %v355 = vld [vmem:[#allocation6 + $0x658] sm:$0xff]
    %v356 = vld [vmem:[#allocation6 + $0x660] sm:$0xff]
    %v357 = vld [vmem:[#allocation6 + $0x668] sm:$0xff]
    %v358 = vld [vmem:[#allocation6 + $0x670] sm:$0xff]
    %v359 = vld [vmem:[#allocation6 + $0x678] sm:$0xff]
    %v360 = vld [vmem:[#allocation6 + $0x680] sm:$0xff]
    %v361 = vld [vmem:[#allocation6 + $0x688] sm:$0xff]
    %v362 = vld [vmem:[#allocation6 + $0x690] sm:$0xff]
    %v363 = vld [vmem:[#allocation6 + $0x698] sm:$0xff]
    %v364 = vld [vmem:[#allocation6 + $0x6a0] sm:$0xff]
    %v365 = vld [vmem:[#allocation6 + $0x6a8] sm:$0xff]
    %v366 = vld [vmem:[#allocation6 + $0x6b0] sm:$0xff]
    %v367 = vld [vmem:[#allocation6 + $0x6b8] sm:$0xff]
    %v368 = vld [vmem:[#allocation6 + $0x6c0] sm:$0xff]
    %v369 = vld [vmem:[#allocation6 + $0x6c8] sm:$0xff]
    %v370 = vld [vmem:[#allocation6 + $0x6d0] sm:$0xff]
    %v371 = vld [vmem:[#allocation6 + $0x6d8] sm:$0xff]
    %v372 = vld [vmem:[#allocation6 + $0x6e0] sm:$0xff]
    %v373 = vld [vmem:[#allocation6 + $0x6e8] sm:$0xff]
    %v374 = vld [vmem:[#allocation6 + $0x6f0] sm:$0xff]
    %v375 = vld [vmem:[#allocation6 + $0x6f8] sm:$0xff]
    %v376 = vld [vmem:[#allocation6 + $0x700] sm:$0xff]
    %v377 = vld [vmem:[#allocation6 + $0x708] sm:$0xff]
    %v378 = vld [vmem:[#allocation6 + $0x710] sm:$0xff]
    %v379 = vld [vmem:[#allocation6 + $0x718] sm:$0xff]
    %v380 = vld [vmem:[#allocation6 + $0x720] sm:$0xff]
    %v381 = vld [vmem:[#allocation6 + $0x728] sm:$0xff]
    %v382 = vld [vmem:[#allocation6 + $0x730] sm:$0xff]
    %v383 = vld [vmem:[#allocation6 + $0x738] sm:$0xff]
    %v384 = vld [vmem:[#allocation6 + $0x740] sm:$0xff]
    %v385 = vld [vmem:[#allocation6 + $0x748] sm:$0xff]
    %v386 = vld [vmem:[#allocation6 + $0x750] sm:$0xff]
    %v387 = vld [vmem:[#allocation6 + $0x758] sm:$0xff]
    %v388 = vld [vmem:[#allocation6 + $0x760] sm:$0xff]
    %v389 = vld [vmem:[#allocation6 + $0x768] sm:$0xff]
    %v390 = vld [vmem:[#allocation6 + $0x770] sm:$0xff]
    %v391 = vld [vmem:[#allocation6 + $0x778] sm:$0xff]
    %v392 = vld [vmem:[#allocation6 + $0x780] sm:$0xff]
    %v393 = vld [vmem:[#allocation6 + $0x788] sm:$0xff]
    %v394 = vld [vmem:[#allocation6 + $0x790] sm:$0xff]
    %v395 = vld [vmem:[#allocation6 + $0x798] sm:$0xff]
    %v396 = vld [vmem:[#allocation6 + $0x7a0] sm:$0xff]
    %v397 = vld [vmem:[#allocation6 + $0x7a8] sm:$0xff]
    %v398 = vld [vmem:[#allocation6 + $0x7b0] sm:$0xff]
    %v399 = vld [vmem:[#allocation6 + $0x7b8] sm:$0xff]
    %v400 = vld [vmem:[#allocation6 + $0x7c0] sm:$0xff]
    %v401 = vld [vmem:[#allocation6 + $0x7c8] sm:$0xff]
    %v402 = vld [vmem:[#allocation6 + $0x7d0] sm:$0xff]
    %v403 = vld [vmem:[#allocation6 + $0x7d8] sm:$0xff]
    %v404 = vld [vmem:[#allocation6 + $0x7e0] sm:$0xff]
    %v405 = vld [vmem:[#allocation6 + $0x7e8] sm:$0xff]
    %v406 = vld [vmem:[#allocation6 + $0x7f0] sm:$0xff]
    %v407 = vld [vmem:[#allocation6 + $0x7f8] sm:$0xff]
    %v408 = vld [vmem:[#allocation6 + $0x800] sm:$0xff]
    %v409 = vld [vmem:[#allocation6 + $0x808] sm:$0xff]
    %v410 = vld [vmem:[#allocation6 + $0x810] sm:$0xff]
    %v411 = vld [vmem:[#allocation6 + $0x818] sm:$0xff]
    %v412 = vld [vmem:[#allocation6 + $0x820] sm:$0xff]
    %v413 = vld [vmem:[#allocation6 + $0x828] sm:$0xff]
    %v414 = vld [vmem:[#allocation6 + $0x830] sm:$0xff]
    %v415 = vld [vmem:[#allocation6 + $0x838] sm:$0xff]
    %v416 = vld [vmem:[#allocation6 + $0x840] sm:$0xff]
    %v417 = vld [vmem:[#allocation6 + $0x848] sm:$0xff]
    %v418 = vld [vmem:[#allocation6 + $0x850] sm:$0xff]
    %v419 = vld [vmem:[#allocation6 + $0x858] sm:$0xff]
    %v420 = vld [vmem:[#allocation6 + $0x860] sm:$0xff]
    %v421 = vld [vmem:[#allocation6 + $0x868] sm:$0xff]
    %v422 = vld [vmem:[#allocation6 + $0x870] sm:$0xff]
    %v423 = vld [vmem:[#allocation6 + $0x878] sm:$0xff]
    %v424 = vld [vmem:[#allocation6 + $0x880] sm:$0xff]
    %v425 = vld [vmem:[#allocation6 + $0x888] sm:$0xff]
    %v426 = vld [vmem:[#allocation6 + $0x890] sm:$0xff]
    %v427 = vld [vmem:[#allocation6 + $0x898] sm:$0xff]
    %v428 = vld [vmem:[#allocation6 + $0x8a0] sm:$0xff]
    %v429 = vld [vmem:[#allocation6 + $0x8a8] sm:$0xff]
    %v430 = vld [vmem:[#allocation6 + $0x8b0] sm:$0xff]
    %v431 = vld [vmem:[#allocation6 + $0x8b8] sm:$0xff]
    %v432 = vld [vmem:[#allocation6 + $0x8c0] sm:$0xff]
    %v433 = vld [vmem:[#allocation6 + $0x8c8] sm:$0xff]
    %v434 = vld [vmem:[#allocation6 + $0x8d0] sm:$0xff]
    %v435 = vld [vmem:[#allocation6 + $0x8d8] sm:$0xff]
    %v436 = vld [vmem:[#allocation6 + $0x8e0] sm:$0xff]
    %v437 = vld [vmem:[#allocation6 + $0x8e8] sm:$0xff]
    %v438 = vld [vmem:[#allocation6 + $0x8f0] sm:$0xff]
    %v439 = vld [vmem:[#allocation6 + $0x8f8] sm:$0xff]
    %v440 = vld [vmem:[#allocation6 + $0x900] sm:$0xff]
    %v441 = vld [vmem:[#allocation6 + $0x908] sm:$0xff]
    %v442 = vld [vmem:[#allocation6 + $0x910] sm:$0xff]
    %v443 = vld [vmem:[#allocation6 + $0x918] sm:$0xff]
    %v444 = vld [vmem:[#allocation6 + $0x920] sm:$0xff]
    %v445 = vld [vmem:[#allocation6 + $0x928] sm:$0xff]
    %v446 = vld [vmem:[#allocation6 + $0x930] sm:$0xff]
    %v447 = vld [vmem:[#allocation6 + $0x938] sm:$0xff]
    %v448 = vld [vmem:[#allocation6 + $0x940] sm:$0xff]
    %v449 = vld [vmem:[#allocation6 + $0x948] sm:$0xff]
    %v450 = vld [vmem:[#allocation6 + $0x950] sm:$0xff]
    %v451 = vld [vmem:[#allocation6 + $0x958] sm:$0xff]
    %v452 = vld [vmem:[#allocation6 + $0x960] sm:$0xff]
    %v453 = vld [vmem:[#allocation6 + $0x968] sm:$0xff]
    %v454 = vld [vmem:[#allocation6 + $0x970] sm:$0xff]
    %v455 = vld [vmem:[#allocation6 + $0x978] sm:$0xff]
    %v456 = vld [vmem:[#allocation6 + $0x980] sm:$0xff]
    %v457 = vld [vmem:[#allocation6 + $0x988] sm:$0xff]
    %v458 = vld [vmem:[#allocation6 + $0x990] sm:$0xff]
    %v459 = vld [vmem:[#allocation6 + $0x998] sm:$0xff]
    %v460 = vld [vmem:[#allocation6 + $0x9a0] sm:$0xff]
    %v461 = vld [vmem:[#allocation6 + $0x9a8] sm:$0xff]
    %v462 = vld [vmem:[#allocation6 + $0x9b0] sm:$0xff]
    %v463 = vld [vmem:[#allocation6 + $0x9b8] sm:$0xff]
    %v464 = vld [vmem:[#allocation6 + $0x9c0] sm:$0xff]
    %v465 = vld [vmem:[#allocation6 + $0x9c8] sm:$0xff]
    %v466 = vld [vmem:[#allocation6 + $0x9d0] sm:$0xff]
    %v467 = vld [vmem:[#allocation6 + $0x9d8] sm:$0xff]
    %v468 = vld [vmem:[#allocation6 + $0x9e0] sm:$0xff]
    %v469 = vld [vmem:[#allocation6 + $0x9e8] sm:$0xff]
    %v470 = vld [vmem:[#allocation6 + $0x9f0] sm:$0xff]
    %v471 = vld [vmem:[#allocation6 + $0x9f8] sm:$0xff]
    %v472 = vld [vmem:[#allocation8] sm:$0xf]
    %v474 = vlaneseq
    %v475 = vshrl.u32 %v474, 7
    %v476 = vsub.s32 0, %v475
    %v477 = vrot.slane %v472, %v476
    %v478 = vlaneseq
    %v479 = vshrl.u32 %v478, 7
    %v480 = vsub.s32 1, %v479
    %v481 = vrot.slane %v472, %v480
    %v482 = vlaneseq
    %v483 = vshrl.u32 %v482, 7
    %v484 = vsub.s32 2, %v483
    %v485 = vrot.slane %v472, %v484
    %v486 = vlaneseq
    %v487 = vshrl.u32 %v486, 7
    %v488 = vsub.s32 3, %v487
    %v489 = vrot.slane %v472, %v488
    %v814 = vunpack.c.l.b16 %v152
    %v815 = vunpack.c.h.b16 %v152
    %v816 = vunpack.c.l.b16 %v153
    %v817 = vunpack.c.h.b16 %v153
    %v818 = vunpack.c.l.b16 %v154
    %v819 = vunpack.c.h.b16 %v154
    %v820 = vunpack.c.l.b16 %v155
    %v821 = vunpack.c.h.b16 %v155
    %v822 = vunpack.c.l.b16 %v156
    %v823 = vunpack.c.h.b16 %v156
    %v824 = vunpack.c.l.b16 %v157
    %v825 = vunpack.c.h.b16 %v157
    %v826 = vunpack.c.l.b16 %v158
    %v827 = vunpack.c.h.b16 %v158
    %v828 = vunpack.c.l.b16 %v159
    %v829 = vunpack.c.h.b16 %v159
    %v830 = vunpack.c.l.b16 %v160
    %v831 = vunpack.c.h.b16 %v160
    %v832 = vunpack.c.l.b16 %v161
    %v833 = vunpack.c.h.b16 %v161
    %v834 = vunpack.c.l.b16 %v162
    %v835 = vunpack.c.h.b16 %v162
    %v836 = vunpack.c.l.b16 %v163
    %v837 = vunpack.c.h.b16 %v163
    %v838 = vunpack.c.l.b16 %v164
    %v839 = vunpack.c.h.b16 %v164
    %v840 = vunpack.c.l.b16 %v165
    %v841 = vunpack.c.h.b16 %v165
    %v842 = vunpack.c.l.b16 %v166
    %v843 = vunpack.c.h.b16 %v166
    %v844 = vunpack.c.l.b16 %v167
    %v845 = vunpack.c.h.b16 %v167
    %v846 = vunpack.c.l.b16 %v168
    %v847 = vunpack.c.h.b16 %v168
    %v848 = vunpack.c.l.b16 %v169
    %v849 = vunpack.c.h.b16 %v169
    %v850 = vunpack.c.l.b16 %v170
    %v851 = vunpack.c.h.b16 %v170
    %v852 = vunpack.c.l.b16 %v171
    %v853 = vunpack.c.h.b16 %v171
    %v854 = vunpack.c.l.b16 %v172
    %v855 = vunpack.c.h.b16 %v172
    %v856 = vunpack.c.l.b16 %v173
    %v857 = vunpack.c.h.b16 %v173
    %v858 = vunpack.c.l.b16 %v174
    %v859 = vunpack.c.h.b16 %v174
    %v860 = vunpack.c.l.b16 %v175
    %v861 = vunpack.c.h.b16 %v175
    %v862 = vunpack.c.l.b16 %v176
    %v863 = vunpack.c.h.b16 %v176
    %v864 = vunpack.c.l.b16 %v177
    %v865 = vunpack.c.h.b16 %v177
    %v866 = vunpack.c.l.b16 %v178
    %v867 = vunpack.c.h.b16 %v178
    %v868 = vunpack.c.l.b16 %v179
    %v869 = vunpack.c.h.b16 %v179
    %v870 = vunpack.c.l.b16 %v180
    %v871 = vunpack.c.h.b16 %v180
    %v872 = vunpack.c.l.b16 %v181
    %v873 = vunpack.c.h.b16 %v181
    %v874 = vunpack.c.l.b16 %v182
    %v875 = vunpack.c.h.b16 %v182
    %v876 = vunpack.c.l.b16 %v183
    %v877 = vunpack.c.h.b16 %v183
    %v878 = vunpack.c.l.b16 %v184
    %v879 = vunpack.c.h.b16 %v184
    %v880 = vunpack.c.l.b16 %v185
    %v881 = vunpack.c.h.b16 %v185
    %v882 = vunpack.c.l.b16 %v186
    %v883 = vunpack.c.h.b16 %v186
    %v884 = vunpack.c.l.b16 %v187
    %v885 = vunpack.c.h.b16 %v187
    %v886 = vunpack.c.l.b16 %v188
    %v887 = vunpack.c.h.b16 %v188
    %v888 = vunpack.c.l.b16 %v189
    %v889 = vunpack.c.h.b16 %v189
    %v890 = vunpack.c.l.b16 %v190
    %v891 = vunpack.c.h.b16 %v190
    %v892 = vunpack.c.l.b16 %v191
    %v893 = vunpack.c.h.b16 %v191
    %v894 = vunpack.c.l.b16 %v192
    %v895 = vunpack.c.h.b16 %v192
    %v896 = vunpack.c.l.b16 %v193
    %v897 = vunpack.c.h.b16 %v193
    %v898 = vunpack.c.l.b16 %v194
    %v899 = vunpack.c.h.b16 %v194
    %v900 = vunpack.c.l.b16 %v195
    %v901 = vunpack.c.h.b16 %v195
    %v902 = vunpack.c.l.b16 %v196
    %v903 = vunpack.c.h.b16 %v196
    %v904 = vunpack.c.l.b16 %v197
    %v905 = vunpack.c.h.b16 %v197
    %v906 = vunpack.c.l.b16 %v198
    %v907 = vunpack.c.h.b16 %v198
    %v908 = vunpack.c.l.b16 %v199
    %v909 = vunpack.c.h.b16 %v199
    %v910 = vunpack.c.l.b16 %v200
    %v911 = vunpack.c.h.b16 %v200
    %v912 = vunpack.c.l.b16 %v201
    %v913 = vunpack.c.h.b16 %v201
    %v914 = vunpack.c.l.b16 %v202
    %v915 = vunpack.c.h.b16 %v202
    %v916 = vunpack.c.l.b16 %v203
    %v917 = vunpack.c.h.b16 %v203
    %v918 = vunpack.c.l.b16 %v204
    %v919 = vunpack.c.h.b16 %v204
    %v920 = vunpack.c.l.b16 %v205
    %v921 = vunpack.c.h.b16 %v205
    %v922 = vunpack.c.l.b16 %v206
    %v923 = vunpack.c.h.b16 %v206
    %v924 = vunpack.c.l.b16 %v207
    %v925 = vunpack.c.h.b16 %v207
    %v926 = vunpack.c.l.b16 %v208
    %v927 = vunpack.c.h.b16 %v208
    %v928 = vunpack.c.l.b16 %v209
    %v929 = vunpack.c.h.b16 %v209
    %v930 = vunpack.c.l.b16 %v210
    %v931 = vunpack.c.h.b16 %v210
    %v932 = vunpack.c.l.b16 %v211
    %v933 = vunpack.c.h.b16 %v211
    %v934 = vunpack.c.l.b16 %v212
    %v935 = vunpack.c.h.b16 %v212
    %v936 = vunpack.c.l.b16 %v213
    %v937 = vunpack.c.h.b16 %v213
    %v938 = vunpack.c.l.b16 %v214
    %v939 = vunpack.c.h.b16 %v214
    %v940 = vunpack.c.l.b16 %v215
    %v941 = vunpack.c.h.b16 %v215
    %v942 = vunpack.c.l.b16 %v216
    %v943 = vunpack.c.h.b16 %v216
    %v944 = vunpack.c.l.b16 %v217
    %v945 = vunpack.c.h.b16 %v217
    %v946 = vunpack.c.l.b16 %v218
    %v947 = vunpack.c.h.b16 %v218
    %v948 = vunpack.c.l.b16 %v219
    %v949 = vunpack.c.h.b16 %v219
    %v950 = vunpack.c.l.b16 %v220
    %v951 = vunpack.c.h.b16 %v220
    %v952 = vunpack.c.l.b16 %v221
    %v953 = vunpack.c.h.b16 %v221
    %v954 = vunpack.c.l.b16 %v222
    %v955 = vunpack.c.h.b16 %v222
    %v956 = vunpack.c.l.b16 %v223
    %v957 = vunpack.c.h.b16 %v223
    %v958 = vunpack.c.l.b16 %v224
    %v959 = vunpack.c.h.b16 %v224
    %v960 = vunpack.c.l.b16 %v225
    %v961 = vunpack.c.h.b16 %v225
    %v962 = vunpack.c.l.b16 %v226
    %v963 = vunpack.c.h.b16 %v226
    %v964 = vunpack.c.l.b16 %v227
    %v965 = vunpack.c.h.b16 %v227
    %v966 = vunpack.c.l.b16 %v228
    %v967 = vunpack.c.h.b16 %v228
    %v968 = vunpack.c.l.b16 %v229
    %v969 = vunpack.c.h.b16 %v229
    %v970 = vunpack.c.l.b16 %v230
    %v971 = vunpack.c.h.b16 %v230
    %v972 = vunpack.c.l.b16 %v231
    %v973 = vunpack.c.h.b16 %v231
    %v974 = vunpack.c.l.b16 %v232
    %v975 = vunpack.c.h.b16 %v232
    %v976 = vunpack.c.l.b16 %v233
    %v977 = vunpack.c.h.b16 %v233
    %v978 = vunpack.c.l.b16 %v234
    %v979 = vunpack.c.h.b16 %v234
    %v980 = vunpack.c.l.b16 %v235
    %v981 = vunpack.c.h.b16 %v235
    %v982 = vunpack.c.l.b16 %v236
    %v983 = vunpack.c.h.b16 %v236
    %v984 = vunpack.c.l.b16 %v237
    %v985 = vunpack.c.h.b16 %v237
    %v986 = vunpack.c.l.b16 %v238
    %v987 = vunpack.c.h.b16 %v238
    %v988 = vunpack.c.l.b16 %v239
    %v989 = vunpack.c.h.b16 %v239
    %v990 = vunpack.c.l.b16 %v240
    %v991 = vunpack.c.h.b16 %v240
    %v992 = vunpack.c.l.b16 %v241
    %v993 = vunpack.c.h.b16 %v241
    %v994 = vunpack.c.l.b16 %v242
    %v995 = vunpack.c.h.b16 %v242
    %v996 = vunpack.c.l.b16 %v243
    %v997 = vunpack.c.h.b16 %v243
    %v998 = vunpack.c.l.b16 %v244
    %v999 = vunpack.c.h.b16 %v244
    %v1000 = vunpack.c.l.b16 %v245
    %v1001 = vunpack.c.h.b16 %v245
    %v1002 = vunpack.c.l.b16 %v246
    %v1003 = vunpack.c.h.b16 %v246
    %v1004 = vunpack.c.l.b16 %v247
    %v1005 = vunpack.c.h.b16 %v247
    %v1006 = vunpack.c.l.b16 %v248
    %v1007 = vunpack.c.h.b16 %v248
    %v1008 = vunpack.c.l.b16 %v249
    %v1009 = vunpack.c.h.b16 %v249
    %v1010 = vunpack.c.l.b16 %v250
    %v1011 = vunpack.c.h.b16 %v250
    %v1012 = vunpack.c.l.b16 %v251
    %v1013 = vunpack.c.h.b16 %v251
    %v1014 = vunpack.c.l.b16 %v252
    %v1015 = vunpack.c.h.b16 %v252
    %v1016 = vunpack.c.l.b16 %v253
    %v1017 = vunpack.c.h.b16 %v253
    %v1018 = vunpack.c.l.b16 %v254
    %v1019 = vunpack.c.h.b16 %v254
    %v1020 = vunpack.c.l.b16 %v255
    %v1021 = vunpack.c.h.b16 %v255
    %v1022 = vunpack.c.l.b16 %v256
    %v1023 = vunpack.c.h.b16 %v256
    %v1024 = vunpack.c.l.b16 %v257
    %v1025 = vunpack.c.h.b16 %v257
    %v1026 = vunpack.c.l.b16 %v258
    %v1027 = vunpack.c.h.b16 %v258
    %v1028 = vunpack.c.l.b16 %v259
    %v1029 = vunpack.c.h.b16 %v259
    %v1030 = vunpack.c.l.b16 %v260
    %v1031 = vunpack.c.h.b16 %v260
    %v1032 = vunpack.c.l.b16 %v261
    %v1033 = vunpack.c.h.b16 %v261
    %v1034 = vunpack.c.l.b16 %v262
    %v1035 = vunpack.c.h.b16 %v262
    %v1036 = vunpack.c.l.b16 %v263
    %v1037 = vunpack.c.h.b16 %v263
    %v1038 = vunpack.c.l.b16 %v264
    %v1039 = vunpack.c.h.b16 %v264
    %v1040 = vunpack.c.l.b16 %v265
    %v1041 = vunpack.c.h.b16 %v265
    %v1042 = vunpack.c.l.b16 %v266
    %v1043 = vunpack.c.h.b16 %v266
    %v1044 = vunpack.c.l.b16 %v267
    %v1045 = vunpack.c.h.b16 %v267
    %v1046 = vunpack.c.l.b16 %v268
    %v1047 = vunpack.c.h.b16 %v268
    %v1048 = vunpack.c.l.b16 %v269
    %v1049 = vunpack.c.h.b16 %v269
    %v1050 = vunpack.c.l.b16 %v270
    %v1051 = vunpack.c.h.b16 %v270
    %v1052 = vunpack.c.l.b16 %v271
    %v1053 = vunpack.c.h.b16 %v271
    %v1054 = vunpack.c.l.b16 %v272
    %v1055 = vunpack.c.h.b16 %v272
    %v1056 = vunpack.c.l.b16 %v273
    %v1057 = vunpack.c.h.b16 %v273
    %v1058 = vunpack.c.l.b16 %v274
    %v1059 = vunpack.c.h.b16 %v274
    %v1060 = vunpack.c.l.b16 %v275
    %v1061 = vunpack.c.h.b16 %v275
    %v1062 = vunpack.c.l.b16 %v276
    %v1063 = vunpack.c.h.b16 %v276
    %v1064 = vunpack.c.l.b16 %v277
    %v1065 = vunpack.c.h.b16 %v277
    %v1066 = vunpack.c.l.b16 %v278
    %v1067 = vunpack.c.h.b16 %v278
    %v1068 = vunpack.c.l.b16 %v279
    %v1069 = vunpack.c.h.b16 %v279
    %v1070 = vunpack.c.l.b16 %v280
    %v1071 = vunpack.c.h.b16 %v280
    %v1072 = vunpack.c.l.b16 %v281
    %v1073 = vunpack.c.h.b16 %v281
    %v1074 = vunpack.c.l.b16 %v282
    %v1075 = vunpack.c.h.b16 %v282
    %v1076 = vunpack.c.l.b16 %v283
    %v1077 = vunpack.c.h.b16 %v283
    %v1078 = vunpack.c.l.b16 %v284
    %v1079 = vunpack.c.h.b16 %v284
    %v1080 = vunpack.c.l.b16 %v285
    %v1081 = vunpack.c.h.b16 %v285
    %v1082 = vunpack.c.l.b16 %v286
    %v1083 = vunpack.c.h.b16 %v286
    %v1084 = vunpack.c.l.b16 %v287
    %v1085 = vunpack.c.h.b16 %v287
    %v1086 = vunpack.c.l.b16 %v288
    %v1087 = vunpack.c.h.b16 %v288
    %v1088 = vunpack.c.l.b16 %v289
    %v1089 = vunpack.c.h.b16 %v289
    %v1090 = vunpack.c.l.b16 %v290
    %v1091 = vunpack.c.h.b16 %v290
    %v1092 = vunpack.c.l.b16 %v291
    %v1093 = vunpack.c.h.b16 %v291
    %v1094 = vunpack.c.l.b16 %v292
    %v1095 = vunpack.c.h.b16 %v292
    %v1096 = vunpack.c.l.b16 %v293
    %v1097 = vunpack.c.h.b16 %v293
    %v1098 = vunpack.c.l.b16 %v294
    %v1099 = vunpack.c.h.b16 %v294
    %v1100 = vunpack.c.l.b16 %v295
    %v1101 = vunpack.c.h.b16 %v295
    %v1102 = vunpack.c.l.b16 %v296
    %v1103 = vunpack.c.h.b16 %v296
    %v1104 = vunpack.c.l.b16 %v297
    %v1105 = vunpack.c.h.b16 %v297
    %v1106 = vunpack.c.l.b16 %v298
    %v1107 = vunpack.c.h.b16 %v298
    %v1108 = vunpack.c.l.b16 %v299
    %v1109 = vunpack.c.h.b16 %v299
    %v1110 = vunpack.c.l.b16 %v300
    %v1111 = vunpack.c.h.b16 %v300
    %v1112 = vunpack.c.l.b16 %v301
    %v1113 = vunpack.c.h.b16 %v301
    %v1114 = vunpack.c.l.b16 %v302
    %v1115 = vunpack.c.h.b16 %v302
    %v1116 = vunpack.c.l.b16 %v303
    %v1117 = vunpack.c.h.b16 %v303
    %v1118 = vunpack.c.l.b16 %v304
    %v1119 = vunpack.c.h.b16 %v304
    %v1120 = vunpack.c.l.b16 %v305
    %v1121 = vunpack.c.h.b16 %v305
    %v1122 = vunpack.c.l.b16 %v306
    %v1123 = vunpack.c.h.b16 %v306
    %v1124 = vunpack.c.l.b16 %v307
    %v1125 = vunpack.c.h.b16 %v307
    %v1126 = vunpack.c.l.b16 %v308
    %v1127 = vunpack.c.h.b16 %v308
    %v1128 = vunpack.c.l.b16 %v309
    %v1129 = vunpack.c.h.b16 %v309
    %v1130 = vunpack.c.l.b16 %v310
    %v1131 = vunpack.c.h.b16 %v310
    %v1132 = vunpack.c.l.b16 %v311
    %v1133 = vunpack.c.h.b16 %v311
    %v1134 = vunpack.c.l.b16 %v312
    %v1135 = vunpack.c.h.b16 %v312
    %v1136 = vunpack.c.l.b16 %v313
    %v1137 = vunpack.c.h.b16 %v313
    %v1138 = vunpack.c.l.b16 %v314
    %v1139 = vunpack.c.h.b16 %v314
    %v1140 = vunpack.c.l.b16 %v315
    %v1141 = vunpack.c.h.b16 %v315
    %v1142 = vunpack.c.l.b16 %v316
    %v1143 = vunpack.c.h.b16 %v316
    %v1144 = vunpack.c.l.b16 %v317
    %v1145 = vunpack.c.h.b16 %v317
    %v1146 = vunpack.c.l.b16 %v318
    %v1147 = vunpack.c.h.b16 %v318
    %v1148 = vunpack.c.l.b16 %v319
    %v1149 = vunpack.c.h.b16 %v319
    %v1150 = vunpack.c.l.b16 %v320
    %v1151 = vunpack.c.h.b16 %v320
    %v1152 = vunpack.c.l.b16 %v321
    %v1153 = vunpack.c.h.b16 %v321
    %v1154 = vunpack.c.l.b16 %v322
    %v1155 = vunpack.c.h.b16 %v322
    %v1156 = vunpack.c.l.b16 %v323
    %v1157 = vunpack.c.h.b16 %v323
    %v1158 = vunpack.c.l.b16 %v324
    %v1159 = vunpack.c.h.b16 %v324
    %v1160 = vunpack.c.l.b16 %v325
    %v1161 = vunpack.c.h.b16 %v325
    %v1162 = vunpack.c.l.b16 %v326
    %v1163 = vunpack.c.h.b16 %v326
    %v1164 = vunpack.c.l.b16 %v327
    %v1165 = vunpack.c.h.b16 %v327
    %v1166 = vunpack.c.l.b16 %v328
    %v1167 = vunpack.c.h.b16 %v328
    %v1168 = vunpack.c.l.b16 %v329
    %v1169 = vunpack.c.h.b16 %v329
    %v1170 = vunpack.c.l.b16 %v330
    %v1171 = vunpack.c.h.b16 %v330
    %v1172 = vunpack.c.l.b16 %v331
    %v1173 = vunpack.c.h.b16 %v331
    %v1174 = vunpack.c.l.b16 %v332
    %v1175 = vunpack.c.h.b16 %v332
    %v1176 = vunpack.c.l.b16 %v333
    %v1177 = vunpack.c.h.b16 %v333
    %v1178 = vunpack.c.l.b16 %v334
    %v1179 = vunpack.c.h.b16 %v334
    %v1180 = vunpack.c.l.b16 %v335
    %v1181 = vunpack.c.h.b16 %v335
    %v1182 = vunpack.c.l.b16 %v336
    %v1183 = vunpack.c.h.b16 %v336
    %v1184 = vunpack.c.l.b16 %v337
    %v1185 = vunpack.c.h.b16 %v337
    %v1186 = vunpack.c.l.b16 %v338
    %v1187 = vunpack.c.h.b16 %v338
    %v1188 = vunpack.c.l.b16 %v339
    %v1189 = vunpack.c.h.b16 %v339
    %v1190 = vunpack.c.l.b16 %v340
    %v1191 = vunpack.c.h.b16 %v340
    %v1192 = vunpack.c.l.b16 %v341
    %v1193 = vunpack.c.h.b16 %v341
    %v1194 = vunpack.c.l.b16 %v342
    %v1195 = vunpack.c.h.b16 %v342
    %v1196 = vunpack.c.l.b16 %v343
    %v1197 = vunpack.c.h.b16 %v343
    %v1198 = vunpack.c.l.b16 %v344
    %v1199 = vunpack.c.h.b16 %v344
    %v1200 = vunpack.c.l.b16 %v345
    %v1201 = vunpack.c.h.b16 %v345
    %v1202 = vunpack.c.l.b16 %v346
    %v1203 = vunpack.c.h.b16 %v346
    %v1204 = vunpack.c.l.b16 %v347
    %v1205 = vunpack.c.h.b16 %v347
    %v1206 = vunpack.c.l.b16 %v348
    %v1207 = vunpack.c.h.b16 %v348
    %v1208 = vunpack.c.l.b16 %v349
    %v1209 = vunpack.c.h.b16 %v349
    %v1210 = vunpack.c.l.b16 %v350
    %v1211 = vunpack.c.h.b16 %v350
    %v1212 = vunpack.c.l.b16 %v351
    %v1213 = vunpack.c.h.b16 %v351
    %v1214 = vunpack.c.l.b16 %v352
    %v1215 = vunpack.c.h.b16 %v352
    %v1216 = vunpack.c.l.b16 %v353
    %v1217 = vunpack.c.h.b16 %v353
    %v1218 = vunpack.c.l.b16 %v354
    %v1219 = vunpack.c.h.b16 %v354
    %v1220 = vunpack.c.l.b16 %v355
    %v1221 = vunpack.c.h.b16 %v355
    %v1222 = vunpack.c.l.b16 %v356
    %v1223 = vunpack.c.h.b16 %v356
    %v1224 = vunpack.c.l.b16 %v357
    %v1225 = vunpack.c.h.b16 %v357
    %v1226 = vunpack.c.l.b16 %v358
    %v1227 = vunpack.c.h.b16 %v358
    %v1228 = vunpack.c.l.b16 %v359
    %v1229 = vunpack.c.h.b16 %v359
    %v1230 = vunpack.c.l.b16 %v360
    %v1231 = vunpack.c.h.b16 %v360
    %v1232 = vunpack.c.l.b16 %v361
    %v1233 = vunpack.c.h.b16 %v361
    %v1234 = vunpack.c.l.b16 %v362
    %v1235 = vunpack.c.h.b16 %v362
    %v1236 = vunpack.c.l.b16 %v363
    %v1237 = vunpack.c.h.b16 %v363
    %v1238 = vunpack.c.l.b16 %v364
    %v1239 = vunpack.c.h.b16 %v364
    %v1240 = vunpack.c.l.b16 %v365
    %v1241 = vunpack.c.h.b16 %v365
    %v1242 = vunpack.c.l.b16 %v366
    %v1243 = vunpack.c.h.b16 %v366
    %v1244 = vunpack.c.l.b16 %v367
    %v1245 = vunpack.c.h.b16 %v367
    %v1246 = vunpack.c.l.b16 %v368
    %v1247 = vunpack.c.h.b16 %v368
    %v1248 = vunpack.c.l.b16 %v369
    %v1249 = vunpack.c.h.b16 %v369
    %v1250 = vunpack.c.l.b16 %v370
    %v1251 = vunpack.c.h.b16 %v370
    %v1252 = vunpack.c.l.b16 %v371
    %v1253 = vunpack.c.h.b16 %v371
    %v1254 = vunpack.c.l.b16 %v372
    %v1255 = vunpack.c.h.b16 %v372
    %v1256 = vunpack.c.l.b16 %v373
    %v1257 = vunpack.c.h.b16 %v373
    %v1258 = vunpack.c.l.b16 %v374
    %v1259 = vunpack.c.h.b16 %v374
    %v1260 = vunpack.c.l.b16 %v375
    %v1261 = vunpack.c.h.b16 %v375
    %v1262 = vunpack.c.l.b16 %v376
    %v1263 = vunpack.c.h.b16 %v376
    %v1264 = vunpack.c.l.b16 %v377
    %v1265 = vunpack.c.h.b16 %v377
    %v1266 = vunpack.c.l.b16 %v378
    %v1267 = vunpack.c.h.b16 %v378
    %v1268 = vunpack.c.l.b16 %v379
    %v1269 = vunpack.c.h.b16 %v379
    %v1270 = vunpack.c.l.b16 %v380
    %v1271 = vunpack.c.h.b16 %v380
    %v1272 = vunpack.c.l.b16 %v381
    %v1273 = vunpack.c.h.b16 %v381
    %v1274 = vunpack.c.l.b16 %v382
    %v1275 = vunpack.c.h.b16 %v382
    %v1276 = vunpack.c.l.b16 %v383
    %v1277 = vunpack.c.h.b16 %v383
    %v1278 = vunpack.c.l.b16 %v384
    %v1279 = vunpack.c.h.b16 %v384
    %v1280 = vunpack.c.l.b16 %v385
    %v1281 = vunpack.c.h.b16 %v385
    %v1282 = vunpack.c.l.b16 %v386
    %v1283 = vunpack.c.h.b16 %v386
    %v1284 = vunpack.c.l.b16 %v387
    %v1285 = vunpack.c.h.b16 %v387
    %v1286 = vunpack.c.l.b16 %v388
    %v1287 = vunpack.c.h.b16 %v388
    %v1288 = vunpack.c.l.b16 %v389
    %v1289 = vunpack.c.h.b16 %v389
    %v1290 = vunpack.c.l.b16 %v390
    %v1291 = vunpack.c.h.b16 %v390
    %v1292 = vunpack.c.l.b16 %v391
    %v1293 = vunpack.c.h.b16 %v391
    %v1294 = vunpack.c.l.b16 %v392
    %v1295 = vunpack.c.h.b16 %v392
    %v1296 = vunpack.c.l.b16 %v393
    %v1297 = vunpack.c.h.b16 %v393
    %v1298 = vunpack.c.l.b16 %v394
    %v1299 = vunpack.c.h.b16 %v394
    %v1300 = vunpack.c.l.b16 %v395
    %v1301 = vunpack.c.h.b16 %v395
    %v1302 = vunpack.c.l.b16 %v396
    %v1303 = vunpack.c.h.b16 %v396
    %v1304 = vunpack.c.l.b16 %v397
    %v1305 = vunpack.c.h.b16 %v397
    %v1306 = vunpack.c.l.b16 %v398
    %v1307 = vunpack.c.h.b16 %v398
    %v1308 = vunpack.c.l.b16 %v399
    %v1309 = vunpack.c.h.b16 %v399
    %v1310 = vunpack.c.l.b16 %v400
    %v1311 = vunpack.c.h.b16 %v400
    %v1312 = vunpack.c.l.b16 %v401
    %v1313 = vunpack.c.h.b16 %v401
    %v1314 = vunpack.c.l.b16 %v402
    %v1315 = vunpack.c.h.b16 %v402
    %v1316 = vunpack.c.l.b16 %v403
    %v1317 = vunpack.c.h.b16 %v403
    %v1318 = vunpack.c.l.b16 %v404
    %v1319 = vunpack.c.h.b16 %v404
    %v1320 = vunpack.c.l.b16 %v405
    %v1321 = vunpack.c.h.b16 %v405
    %v1322 = vunpack.c.l.b16 %v406
    %v1323 = vunpack.c.h.b16 %v406
    %v1324 = vunpack.c.l.b16 %v407
    %v1325 = vunpack.c.h.b16 %v407
    %v1326 = vunpack.c.l.b16 %v408
    %v1327 = vunpack.c.h.b16 %v408
    %v1328 = vunpack.c.l.b16 %v409
    %v1329 = vunpack.c.h.b16 %v409
    %v1330 = vunpack.c.l.b16 %v410
    %v1331 = vunpack.c.h.b16 %v410
    %v1332 = vunpack.c.l.b16 %v411
    %v1333 = vunpack.c.h.b16 %v411
    %v1334 = vunpack.c.l.b16 %v412
    %v1335 = vunpack.c.h.b16 %v412
    %v1336 = vunpack.c.l.b16 %v413
    %v1337 = vunpack.c.h.b16 %v413
    %v1338 = vunpack.c.l.b16 %v414
    %v1339 = vunpack.c.h.b16 %v414
    %v1340 = vunpack.c.l.b16 %v415
    %v1341 = vunpack.c.h.b16 %v415
    %v1342 = vunpack.c.l.b16 %v416
    %v1343 = vunpack.c.h.b16 %v416
    %v1344 = vunpack.c.l.b16 %v417
    %v1345 = vunpack.c.h.b16 %v417
    %v1346 = vunpack.c.l.b16 %v418
    %v1347 = vunpack.c.h.b16 %v418
    %v1348 = vunpack.c.l.b16 %v419
    %v1349 = vunpack.c.h.b16 %v419
    %v1350 = vunpack.c.l.b16 %v420
    %v1351 = vunpack.c.h.b16 %v420
    %v1352 = vunpack.c.l.b16 %v421
    %v1353 = vunpack.c.h.b16 %v421
    %v1354 = vunpack.c.l.b16 %v422
    %v1355 = vunpack.c.h.b16 %v422
    %v1356 = vunpack.c.l.b16 %v423
    %v1357 = vunpack.c.h.b16 %v423
    %v1358 = vunpack.c.l.b16 %v424
    %v1359 = vunpack.c.h.b16 %v424
    %v1360 = vunpack.c.l.b16 %v425
    %v1361 = vunpack.c.h.b16 %v425
    %v1362 = vunpack.c.l.b16 %v426
    %v1363 = vunpack.c.h.b16 %v426
    %v1364 = vunpack.c.l.b16 %v427
    %v1365 = vunpack.c.h.b16 %v427
    %v1366 = vunpack.c.l.b16 %v428
    %v1367 = vunpack.c.h.b16 %v428
    %v1368 = vunpack.c.l.b16 %v429
    %v1369 = vunpack.c.h.b16 %v429
    %v1370 = vunpack.c.l.b16 %v430
    %v1371 = vunpack.c.h.b16 %v430
    %v1372 = vunpack.c.l.b16 %v431
    %v1373 = vunpack.c.h.b16 %v431
    %v1374 = vunpack.c.l.b16 %v432
    %v1375 = vunpack.c.h.b16 %v432
    %v1376 = vunpack.c.l.b16 %v433
    %v1377 = vunpack.c.h.b16 %v433
    %v1378 = vunpack.c.l.b16 %v434
    %v1379 = vunpack.c.h.b16 %v434
    %v1380 = vunpack.c.l.b16 %v435
    %v1381 = vunpack.c.h.b16 %v435
    %v1382 = vunpack.c.l.b16 %v436
    %v1383 = vunpack.c.h.b16 %v436
    %v1384 = vunpack.c.l.b16 %v437
    %v1385 = vunpack.c.h.b16 %v437
    %v1386 = vunpack.c.l.b16 %v438
    %v1387 = vunpack.c.h.b16 %v438
    %v1388 = vunpack.c.l.b16 %v439
    %v1389 = vunpack.c.h.b16 %v439
    %v1390 = vunpack.c.l.b16 %v440
    %v1391 = vunpack.c.h.b16 %v440
    %v1392 = vunpack.c.l.b16 %v441
    %v1393 = vunpack.c.h.b16 %v441
    %v1394 = vunpack.c.l.b16 %v442
    %v1395 = vunpack.c.h.b16 %v442
    %v1396 = vunpack.c.l.b16 %v443
    %v1397 = vunpack.c.h.b16 %v443
    %v1398 = vunpack.c.l.b16 %v444
    %v1399 = vunpack.c.h.b16 %v444
    %v1400 = vunpack.c.l.b16 %v445
    %v1401 = vunpack.c.h.b16 %v445
    %v1402 = vunpack.c.l.b16 %v446
    %v1403 = vunpack.c.h.b16 %v446
    %v1404 = vunpack.c.l.b16 %v447
    %v1405 = vunpack.c.h.b16 %v447
    %v1406 = vunpack.c.l.b16 %v448
    %v1407 = vunpack.c.h.b16 %v448
    %v1408 = vunpack.c.l.b16 %v449
    %v1409 = vunpack.c.h.b16 %v449
    %v1410 = vunpack.c.l.b16 %v450
    %v1411 = vunpack.c.h.b16 %v450
    %v1412 = vunpack.c.l.b16 %v451
    %v1413 = vunpack.c.h.b16 %v451
    %v1414 = vunpack.c.l.b16 %v452
    %v1415 = vunpack.c.h.b16 %v452
    %v1416 = vunpack.c.l.b16 %v453
    %v1417 = vunpack.c.h.b16 %v453
    %v1418 = vunpack.c.l.b16 %v454
    %v1419 = vunpack.c.h.b16 %v454
    %v1420 = vunpack.c.l.b16 %v455
    %v1421 = vunpack.c.h.b16 %v455
    %v1422 = vunpack.c.l.b16 %v456
    %v1423 = vunpack.c.h.b16 %v456
    %v1424 = vunpack.c.l.b16 %v457
    %v1425 = vunpack.c.h.b16 %v457
    %v1426 = vunpack.c.l.b16 %v458
    %v1427 = vunpack.c.h.b16 %v458
    %v1428 = vunpack.c.l.b16 %v459
    %v1429 = vunpack.c.h.b16 %v459
    %v1430 = vunpack.c.l.b16 %v460
    %v1431 = vunpack.c.h.b16 %v460
    %v1432 = vunpack.c.l.b16 %v461
    %v1433 = vunpack.c.h.b16 %v461
    %v1434 = vunpack.c.l.b16 %v462
    %v1435 = vunpack.c.h.b16 %v462
    %v1436 = vunpack.c.l.b16 %v463
    %v1437 = vunpack.c.h.b16 %v463
    %v1438 = vunpack.c.l.b16 %v464
    %v1439 = vunpack.c.h.b16 %v464
    %v1440 = vunpack.c.l.b16 %v465
    %v1441 = vunpack.c.h.b16 %v465
    %v1442 = vunpack.c.l.b16 %v466
    %v1443 = vunpack.c.h.b16 %v466
    %v1444 = vunpack.c.l.b16 %v467
    %v1445 = vunpack.c.h.b16 %v467
    %v1446 = vunpack.c.l.b16 %v468
    %v1447 = vunpack.c.h.b16 %v468
    %v1448 = vunpack.c.l.b16 %v469
    %v1449 = vunpack.c.h.b16 %v469
    %v1450 = vunpack.c.l.b16 %v470
    %v1451 = vunpack.c.h.b16 %v470
    %v1452 = vunpack.c.l.b16 %v471
    %v1453 = vunpack.c.h.b16 %v471
    %v1454 = vpack.c.b16 %v818, %v814
    %v1455 = vpack.c.b16 %v819, %v815
    %v1456 = vpack.c.b16 %v820, %v816
    %v1457 = vpack.c.b16 %v821, %v817
    %v1458 = vpack.c.b16 %v826, %v822
    %v1459 = vpack.c.b16 %v827, %v823
    %v1460 = vpack.c.b16 %v828, %v824
    %v1461 = vpack.c.b16 %v829, %v825
    %v1462 = vpack.c.b16 %v834, %v830
    %v1463 = vpack.c.b16 %v835, %v831
    %v1464 = vpack.c.b16 %v836, %v832
    %v1465 = vpack.c.b16 %v837, %v833
    %v1466 = vpack.c.b16 %v842, %v838
    %v1467 = vpack.c.b16 %v843, %v839
    %v1468 = vpack.c.b16 %v844, %v840
    %v1469 = vpack.c.b16 %v845, %v841
    %v1470 = vpack.c.b16 %v850, %v846
    %v1471 = vpack.c.b16 %v851, %v847
    %v1472 = vpack.c.b16 %v852, %v848
    %v1473 = vpack.c.b16 %v853, %v849
    %v1474 = vpack.c.b16 %v858, %v854
    %v1475 = vpack.c.b16 %v859, %v855
    %v1476 = vpack.c.b16 %v860, %v856
    %v1477 = vpack.c.b16 %v861, %v857
    %v1478 = vpack.c.b16 %v866, %v862
    %v1479 = vpack.c.b16 %v867, %v863
    %v1480 = vpack.c.b16 %v868, %v864
    %v1481 = vpack.c.b16 %v869, %v865
    %v1482 = vpack.c.b16 %v874, %v870
    %v1483 = vpack.c.b16 %v875, %v871
    %v1484 = vpack.c.b16 %v876, %v872
    %v1485 = vpack.c.b16 %v877, %v873
    %v1486 = vpack.c.b16 %v882, %v878
    %v1487 = vpack.c.b16 %v883, %v879
    %v1488 = vpack.c.b16 %v884, %v880
    %v1489 = vpack.c.b16 %v885, %v881
    %v1490 = vpack.c.b16 %v890, %v886
    %v1491 = vpack.c.b16 %v891, %v887
    %v1492 = vpack.c.b16 %v892, %v888
    %v1493 = vpack.c.b16 %v893, %v889
    %v1494 = vpack.c.b16 %v898, %v894
    %v1495 = vpack.c.b16 %v899, %v895
    %v1496 = vpack.c.b16 %v900, %v896
    %v1497 = vpack.c.b16 %v901, %v897
    %v1498 = vpack.c.b16 %v906, %v902
    %v1499 = vpack.c.b16 %v907, %v903
    %v1500 = vpack.c.b16 %v908, %v904
    %v1501 = vpack.c.b16 %v909, %v905
    %v1502 = vpack.c.b16 %v914, %v910
    %v1503 = vpack.c.b16 %v915, %v911
    %v1504 = vpack.c.b16 %v916, %v912
    %v1505 = vpack.c.b16 %v917, %v913
    %v1506 = vpack.c.b16 %v922, %v918
    %v1507 = vpack.c.b16 %v923, %v919
    %v1508 = vpack.c.b16 %v924, %v920
    %v1509 = vpack.c.b16 %v925, %v921
    %v1510 = vpack.c.b16 %v930, %v926
    %v1511 = vpack.c.b16 %v931, %v927
    %v1512 = vpack.c.b16 %v932, %v928
    %v1513 = vpack.c.b16 %v933, %v929
    %v1514 = vpack.c.b16 %v938, %v934
    %v1515 = vpack.c.b16 %v939, %v935
    %v1516 = vpack.c.b16 %v940, %v936
    %v1517 = vpack.c.b16 %v941, %v937
    %v1518 = vpack.c.b16 %v946, %v942
    %v1519 = vpack.c.b16 %v947, %v943
    %v1520 = vpack.c.b16 %v948, %v944
    %v1521 = vpack.c.b16 %v949, %v945
    %v1522 = vpack.c.b16 %v954, %v950
    %v1523 = vpack.c.b16 %v955, %v951
    %v1524 = vpack.c.b16 %v956, %v952
    %v1525 = vpack.c.b16 %v957, %v953
    %v1526 = vpack.c.b16 %v962, %v958
    %v1527 = vpack.c.b16 %v963, %v959
    %v1528 = vpack.c.b16 %v964, %v960
    %v1529 = vpack.c.b16 %v965, %v961
    %v1530 = vpack.c.b16 %v970, %v966
    %v1531 = vpack.c.b16 %v971, %v967
    %v1532 = vpack.c.b16 %v972, %v968
    %v1533 = vpack.c.b16 %v973, %v969
    %v1534 = vpack.c.b16 %v978, %v974
    %v1535 = vpack.c.b16 %v979, %v975
    %v1536 = vpack.c.b16 %v980, %v976
    %v1537 = vpack.c.b16 %v981, %v977
    %v1538 = vpack.c.b16 %v986, %v982
    %v1539 = vpack.c.b16 %v987, %v983
    %v1540 = vpack.c.b16 %v988, %v984
    %v1541 = vpack.c.b16 %v989, %v985
    %v1542 = vpack.c.b16 %v994, %v990
    %v1543 = vpack.c.b16 %v995, %v991
    %v1544 = vpack.c.b16 %v996, %v992
    %v1545 = vpack.c.b16 %v997, %v993
    %v1546 = vpack.c.b16 %v1002, %v998
    %v1547 = vpack.c.b16 %v1003, %v999
    %v1548 = vpack.c.b16 %v1004, %v1000
    %v1549 = vpack.c.b16 %v1005, %v1001
    %v1550 = vpack.c.b16 %v1010, %v1006
    %v1551 = vpack.c.b16 %v1011, %v1007
    %v1552 = vpack.c.b16 %v1012, %v1008
    %v1553 = vpack.c.b16 %v1013, %v1009
    %v1554 = vpack.c.b16 %v1018, %v1014
    %v1555 = vpack.c.b16 %v1019, %v1015
    %v1556 = vpack.c.b16 %v1020, %v1016
    %v1557 = vpack.c.b16 %v1021, %v1017
    %v1558 = vpack.c.b16 %v1026, %v1022
    %v1559 = vpack.c.b16 %v1027, %v1023
    %v1560 = vpack.c.b16 %v1028, %v1024
    %v1561 = vpack.c.b16 %v1029, %v1025
    %v1562 = vpack.c.b16 %v1034, %v1030
    %v1563 = vpack.c.b16 %v1035, %v1031
    %v1564 = vpack.c.b16 %v1036, %v1032
    %v1565 = vpack.c.b16 %v1037, %v1033
    %v1566 = vpack.c.b16 %v1042, %v1038
    %v1567 = vpack.c.b16 %v1043, %v1039
    %v1568 = vpack.c.b16 %v1044, %v1040
    %v1569 = vpack.c.b16 %v1045, %v1041
    %v1570 = vpack.c.b16 %v1050, %v1046
    %v1571 = vpack.c.b16 %v1051, %v1047
    %v1572 = vpack.c.b16 %v1052, %v1048
    %v1573 = vpack.c.b16 %v1053, %v1049
    %v1574 = vpack.c.b16 %v1058, %v1054
    %v1575 = vpack.c.b16 %v1059, %v1055
    %v1576 = vpack.c.b16 %v1060, %v1056
    %v1577 = vpack.c.b16 %v1061, %v1057
    %v1578 = vpack.c.b16 %v1066, %v1062
    %v1579 = vpack.c.b16 %v1067, %v1063
    %v1580 = vpack.c.b16 %v1068, %v1064
    %v1581 = vpack.c.b16 %v1069, %v1065
    %v1582 = vpack.c.b16 %v1074, %v1070
    %v1583 = vpack.c.b16 %v1075, %v1071
    %v1584 = vpack.c.b16 %v1076, %v1072
    %v1585 = vpack.c.b16 %v1077, %v1073
    %v1586 = vpack.c.b16 %v1082, %v1078
    %v1587 = vpack.c.b16 %v1083, %v1079
    %v1588 = vpack.c.b16 %v1084, %v1080
    %v1589 = vpack.c.b16 %v1085, %v1081
    %v1590 = vpack.c.b16 %v1090, %v1086
    %v1591 = vpack.c.b16 %v1091, %v1087
    %v1592 = vpack.c.b16 %v1092, %v1088
    %v1593 = vpack.c.b16 %v1093, %v1089
    %v1594 = vpack.c.b16 %v1098, %v1094
    %v1595 = vpack.c.b16 %v1099, %v1095
    %v1596 = vpack.c.b16 %v1100, %v1096
    %v1597 = vpack.c.b16 %v1101, %v1097
    %v1598 = vpack.c.b16 %v1106, %v1102
    %v1599 = vpack.c.b16 %v1107, %v1103
    %v1600 = vpack.c.b16 %v1108, %v1104
    %v1601 = vpack.c.b16 %v1109, %v1105
    %v1602 = vpack.c.b16 %v1114, %v1110
    %v1603 = vpack.c.b16 %v1115, %v1111
    %v1604 = vpack.c.b16 %v1116, %v1112
    %v1605 = vpack.c.b16 %v1117, %v1113
    %v1606 = vpack.c.b16 %v1122, %v1118
    %v1607 = vpack.c.b16 %v1123, %v1119
    %v1608 = vpack.c.b16 %v1124, %v1120
    %v1609 = vpack.c.b16 %v1125, %v1121
    %v1610 = vpack.c.b16 %v1130, %v1126
    %v1611 = vpack.c.b16 %v1131, %v1127
    %v1612 = vpack.c.b16 %v1132, %v1128
    %v1613 = vpack.c.b16 %v1133, %v1129
    %v1614 = vpack.c.b16 %v1138, %v1134
    %v1615 = vpack.c.b16 %v1139, %v1135
    %v1616 = vpack.c.b16 %v1140, %v1136
    %v1617 = vpack.c.b16 %v1141, %v1137
    %v1618 = vpack.c.b16 %v1146, %v1142
    %v1619 = vpack.c.b16 %v1147, %v1143
    %v1620 = vpack.c.b16 %v1148, %v1144
    %v1621 = vpack.c.b16 %v1149, %v1145
    %v1622 = vpack.c.b16 %v1154, %v1150
    %v1623 = vpack.c.b16 %v1155, %v1151
    %v1624 = vpack.c.b16 %v1156, %v1152
    %v1625 = vpack.c.b16 %v1157, %v1153
    %v1626 = vpack.c.b16 %v1162, %v1158
    %v1627 = vpack.c.b16 %v1163, %v1159
    %v1628 = vpack.c.b16 %v1164, %v1160
    %v1629 = vpack.c.b16 %v1165, %v1161
    %v1630 = vpack.c.b16 %v1170, %v1166
    %v1631 = vpack.c.b16 %v1171, %v1167
    %v1632 = vpack.c.b16 %v1172, %v1168
    %v1633 = vpack.c.b16 %v1173, %v1169
    %v1634 = vpack.c.b16 %v1178, %v1174
    %v1635 = vpack.c.b16 %v1179, %v1175
    %v1636 = vpack.c.b16 %v1180, %v1176
    %v1637 = vpack.c.b16 %v1181, %v1177
    %v1638 = vpack.c.b16 %v1186, %v1182
    %v1639 = vpack.c.b16 %v1187, %v1183
    %v1640 = vpack.c.b16 %v1188, %v1184
    %v1641 = vpack.c.b16 %v1189, %v1185
    %v1642 = vpack.c.b16 %v1194, %v1190
    %v1643 = vpack.c.b16 %v1195, %v1191
    %v1644 = vpack.c.b16 %v1196, %v1192
    %v1645 = vpack.c.b16 %v1197, %v1193
    %v1646 = vpack.c.b16 %v1202, %v1198
    %v1647 = vpack.c.b16 %v1203, %v1199
    %v1648 = vpack.c.b16 %v1204, %v1200
    %v1649 = vpack.c.b16 %v1205, %v1201
    %v1650 = vpack.c.b16 %v1210, %v1206
    %v1651 = vpack.c.b16 %v1211, %v1207
    %v1652 = vpack.c.b16 %v1212, %v1208
    %v1653 = vpack.c.b16 %v1213, %v1209
    %v1654 = vpack.c.b16 %v1218, %v1214
    %v1655 = vpack.c.b16 %v1219, %v1215
    %v1656 = vpack.c.b16 %v1220, %v1216
    %v1657 = vpack.c.b16 %v1221, %v1217
    %v1658 = vpack.c.b16 %v1226, %v1222
    %v1659 = vpack.c.b16 %v1227, %v1223
    %v1660 = vpack.c.b16 %v1228, %v1224
    %v1661 = vpack.c.b16 %v1229, %v1225
    %v1662 = vpack.c.b16 %v1234, %v1230
    %v1663 = vpack.c.b16 %v1235, %v1231
    %v1664 = vpack.c.b16 %v1236, %v1232
    %v1665 = vpack.c.b16 %v1237, %v1233
    %v1666 = vpack.c.b16 %v1242, %v1238
    %v1667 = vpack.c.b16 %v1243, %v1239
    %v1668 = vpack.c.b16 %v1244, %v1240
    %v1669 = vpack.c.b16 %v1245, %v1241
    %v1670 = vpack.c.b16 %v1250, %v1246
    %v1671 = vpack.c.b16 %v1251, %v1247
    %v1672 = vpack.c.b16 %v1252, %v1248
    %v1673 = vpack.c.b16 %v1253, %v1249
    %v1674 = vpack.c.b16 %v1258, %v1254
    %v1675 = vpack.c.b16 %v1259, %v1255
    %v1676 = vpack.c.b16 %v1260, %v1256
    %v1677 = vpack.c.b16 %v1261, %v1257
    %v1678 = vpack.c.b16 %v1266, %v1262
    %v1679 = vpack.c.b16 %v1267, %v1263
    %v1680 = vpack.c.b16 %v1268, %v1264
    %v1681 = vpack.c.b16 %v1269, %v1265
    %v1682 = vpack.c.b16 %v1274, %v1270
    %v1683 = vpack.c.b16 %v1275, %v1271
    %v1684 = vpack.c.b16 %v1276, %v1272
    %v1685 = vpack.c.b16 %v1277, %v1273
    %v1686 = vpack.c.b16 %v1282, %v1278
    %v1687 = vpack.c.b16 %v1283, %v1279
    %v1688 = vpack.c.b16 %v1284, %v1280
    %v1689 = vpack.c.b16 %v1285, %v1281
    %v1690 = vpack.c.b16 %v1290, %v1286
    %v1691 = vpack.c.b16 %v1291, %v1287
    %v1692 = vpack.c.b16 %v1292, %v1288
    %v1693 = vpack.c.b16 %v1293, %v1289
    %v1694 = vpack.c.b16 %v1298, %v1294
    %v1695 = vpack.c.b16 %v1299, %v1295
    %v1696 = vpack.c.b16 %v1300, %v1296
    %v1697 = vpack.c.b16 %v1301, %v1297
    %v1698 = vpack.c.b16 %v1306, %v1302
    %v1699 = vpack.c.b16 %v1307, %v1303
    %v1700 = vpack.c.b16 %v1308, %v1304
    %v1701 = vpack.c.b16 %v1309, %v1305
    %v1702 = vpack.c.b16 %v1314, %v1310
    %v1703 = vpack.c.b16 %v1315, %v1311
    %v1704 = vpack.c.b16 %v1316, %v1312
    %v1705 = vpack.c.b16 %v1317, %v1313
    %v1706 = vpack.c.b16 %v1322, %v1318
    %v1707 = vpack.c.b16 %v1323, %v1319
    %v1708 = vpack.c.b16 %v1324, %v1320
    %v1709 = vpack.c.b16 %v1325, %v1321
    %v1710 = vpack.c.b16 %v1330, %v1326
    %v1711 = vpack.c.b16 %v1331, %v1327
    %v1712 = vpack.c.b16 %v1332, %v1328
    %v1713 = vpack.c.b16 %v1333, %v1329
    %v1714 = vpack.c.b16 %v1338, %v1334
    %v1715 = vpack.c.b16 %v1339, %v1335
    %v1716 = vpack.c.b16 %v1340, %v1336
    %v1717 = vpack.c.b16 %v1341, %v1337
    %v1718 = vpack.c.b16 %v1346, %v1342
    %v1719 = vpack.c.b16 %v1347, %v1343
    %v1720 = vpack.c.b16 %v1348, %v1344
    %v1721 = vpack.c.b16 %v1349, %v1345
    %v1722 = vpack.c.b16 %v1354, %v1350
    %v1723 = vpack.c.b16 %v1355, %v1351
    %v1724 = vpack.c.b16 %v1356, %v1352
    %v1725 = vpack.c.b16 %v1357, %v1353
    %v1726 = vpack.c.b16 %v1362, %v1358
    %v1727 = vpack.c.b16 %v1363, %v1359
    %v1728 = vpack.c.b16 %v1364, %v1360
    %v1729 = vpack.c.b16 %v1365, %v1361
    %v1730 = vpack.c.b16 %v1370, %v1366
    %v1731 = vpack.c.b16 %v1371, %v1367
    %v1732 = vpack.c.b16 %v1372, %v1368
    %v1733 = vpack.c.b16 %v1373, %v1369
    %v1734 = vpack.c.b16 %v1378, %v1374
    %v1735 = vpack.c.b16 %v1379, %v1375
    %v1736 = vpack.c.b16 %v1380, %v1376
    %v1737 = vpack.c.b16 %v1381, %v1377
    %v1738 = vpack.c.b16 %v1386, %v1382
    %v1739 = vpack.c.b16 %v1387, %v1383
    %v1740 = vpack.c.b16 %v1388, %v1384
    %v1741 = vpack.c.b16 %v1389, %v1385
    %v1742 = vpack.c.b16 %v1394, %v1390
    %v1743 = vpack.c.b16 %v1395, %v1391
    %v1744 = vpack.c.b16 %v1396, %v1392
    %v1745 = vpack.c.b16 %v1397, %v1393
    %v1746 = vpack.c.b16 %v1402, %v1398
    %v1747 = vpack.c.b16 %v1403, %v1399
    %v1748 = vpack.c.b16 %v1404, %v1400
    %v1749 = vpack.c.b16 %v1405, %v1401
    %v1750 = vpack.c.b16 %v1410, %v1406
    %v1751 = vpack.c.b16 %v1411, %v1407
    %v1752 = vpack.c.b16 %v1412, %v1408
    %v1753 = vpack.c.b16 %v1413, %v1409
    %v1754 = vpack.c.b16 %v1418, %v1414
    %v1755 = vpack.c.b16 %v1419, %v1415
    %v1756 = vpack.c.b16 %v1420, %v1416
    %v1757 = vpack.c.b16 %v1421, %v1417
    %v1758 = vpack.c.b16 %v1426, %v1422
    %v1759 = vpack.c.b16 %v1427, %v1423
    %v1760 = vpack.c.b16 %v1428, %v1424
    %v1761 = vpack.c.b16 %v1429, %v1425
    %v1762 = vpack.c.b16 %v1434, %v1430
    %v1763 = vpack.c.b16 %v1435, %v1431
    %v1764 = vpack.c.b16 %v1436, %v1432
    %v1765 = vpack.c.b16 %v1437, %v1433
    %v1766 = vpack.c.b16 %v1442, %v1438
    %v1767 = vpack.c.b16 %v1443, %v1439
    %v1768 = vpack.c.b16 %v1444, %v1440
    %v1769 = vpack.c.b16 %v1445, %v1441
    %v1770 = vpack.c.b16 %v1450, %v1446
    %v1771 = vpack.c.b16 %v1451, %v1447
    %v1772 = vpack.c.b16 %v1452, %v1448
    %v1773 = vpack.c.b16 %v1453, %v1449
    %2094 = vmatprep.subr.bf16.mxu0 %v1455
    %2095 = vmatpush1.bf16.msra.mxu0 %v1454
    %2096 = vmatprep.subr.bf16.mxu0 %v1459
    %2097 = vmatpush1.bf16.msra.mxu0 %v1458
    %2098 = vmatprep.subr.bf16.mxu0 %v1463
    %2099 = vmatpush1.bf16.msra.mxu0 %v1462
    %2100 = vmatprep.subr.bf16.mxu0 %v1467
    %2101 = vmatpush1.bf16.msra.mxu0 %v1466
    %2102 = vmatprep.subr.bf16.mxu0 %v1471
    %2103 = vmatpush1.bf16.msra.mxu0 %v1470
    %2104 = vmatprep.subr.bf16.mxu0 %v1475
    %2105 = vmatpush1.bf16.msra.mxu0 %v1474
    %2106 = vmatprep.subr.bf16.mxu0 %v1479
    %2107 = vmatpush1.bf16.msra.mxu0 %v1478
    %2108 = vmatprep.subr.bf16.mxu0 %v1483
    %2109 = vmatpush1.bf16.msra.mxu0 %v1482
    %2110 = vmatprep.subr.bf16.mxu0 %v1487
    %2111 = vmatpush1.bf16.msra.mxu0 %v1486
    %2112 = vmatprep.subr.bf16.mxu0 %v1491
    %2113 = vmatpush1.bf16.msra.mxu0 %v1490
    %2114 = vmatprep.subr.bf16.mxu0 %v1495
    %2115 = vmatpush1.bf16.msra.mxu0 %v1494
    %2116 = vmatprep.subr.bf16.mxu0 %v1499
    %2117 = vmatpush1.bf16.msra.mxu0 %v1498
    %2118 = vmatprep.subr.bf16.mxu0 %v1503
    %2119 = vmatpush1.bf16.msra.mxu0 %v1502
    %2120 = vmatprep.subr.bf16.mxu0 %v1507
    %2121 = vmatpush1.bf16.msra.mxu0 %v1506
    %2122 = vmatprep.subr.bf16.mxu0 %v1511
    %2123 = vmatpush1.bf16.msra.mxu0 %v1510
    %2124 = vmatprep.subr.bf16.mxu0 %v1515
    %2125 = vmatpush1.bf16.msra.mxu0 %v1514
    %2126 = vmatprep.mubr.bf16.mxu0 %v143
    %2127 = vmatmul.mubr.bf16.gmra.mrb[0].mxu0 %v142
    %v2128 = vpop.f32.mrb[0].mxu0
    %v2129 = vadd.f32 %v477, %v2128
    %v2130 = vpop.f32.mrb[0].mxu0
    %v2131 = vadd.f32 %v481, %v2130
    %v2132 = vpop.f32.mrb[0].mxu0
    %v2133 = vpop.f32.mrb[0].mxu0
    %2134 = vdwg.mxu0
    %2135 = vmatprep.subr.bf16.mxu0 %v1519
    %2136 = vmatpush1.bf16.msra.mxu0 %v1518
    %2137 = vmatprep.subr.bf16.mxu0 %v1523
    %2138 = vmatpush1.bf16.msra.mxu0 %v1522
    %2139 = vmatprep.subr.bf16.mxu0 %v1527
    %2140 = vmatpush1.bf16.msra.mxu0 %v1526
    %2141 = vmatprep.subr.bf16.mxu0 %v1531
    %2142 = vmatpush1.bf16.msra.mxu0 %v1530
    %2143 = vmatprep.subr.bf16.mxu0 %v1535
    %2144 = vmatpush1.bf16.msra.mxu0 %v1534
    %2145 = vmatprep.subr.bf16.mxu0 %v1539
    %2146 = vmatpush1.bf16.msra.mxu0 %v1538
    %2147 = vmatprep.subr.bf16.mxu0 %v1543
    %2148 = vmatpush1.bf16.msra.mxu0 %v1542
    %2149 = vmatprep.subr.bf16.mxu0 %v1547
    %2150 = vmatpush1.bf16.msra.mxu0 %v1546
    %2151 = vmatprep.subr.bf16.mxu0 %v1551
    %2152 = vmatpush1.bf16.msra.mxu0 %v1550
    %2153 = vmatprep.subr.bf16.mxu0 %v1555
    %2154 = vmatpush1.bf16.msra.mxu0 %v1554
    %2155 = vmatprep.subr.bf16.mxu0 %v1559
    %2156 = vmatpush1.bf16.msra.mxu0 %v1558
    %2157 = vmatprep.subr.bf16.mxu0 %v1563
    %2158 = vmatpush1.bf16.msra.mxu0 %v1562
    %2159 = vmatprep.subr.bf16.mxu0 %v1567
    %2160 = vmatpush1.bf16.msra.mxu0 %v1566
    %2161 = vmatprep.subr.bf16.mxu0 %v1571
    %2162 = vmatpush1.bf16.msra.mxu0 %v1570
    %2163 = vmatprep.subr.bf16.mxu0 %v1575
    %2164 = vmatpush1.bf16.msra.mxu0 %v1574
    %2165 = vmatprep.subr.bf16.mxu0 %v1579
    %2166 = vmatpush1.bf16.msra.mxu0 %v1578
    %2167 = vmatprep.mubr.bf16.mxu0 %v145
    %2168 = vmatmul.mubr.bf16.gmra.mrb[0].mxu0 %v144
    %v2169 = vpop.f32.mrb[0].mxu0
    %v2170 = vadd.f32 %v2129, %v2169
    %v2171 = vpop.f32.mrb[0].mxu0
    %v2172 = vadd.f32 %v2131, %v2171
    %v2173 = vpop.f32.mrb[0].mxu0
    %v2174 = vpop.f32.mrb[0].mxu0
    %2175 = vdwg.mxu0
    %2176 = vmatprep.subr.bf16.mxu0 %v1583
    %2177 = vmatpush1.bf16.msra.mxu0 %v1582
    %2178 = vmatprep.subr.bf16.mxu0 %v1587
    %2179 = vmatpush1.bf16.msra.mxu0 %v1586
    %2180 = vmatprep.subr.bf16.mxu0 %v1591
    %2181 = vmatpush1.bf16.msra.mxu0 %v1590
    %2182 = vmatprep.subr.bf16.mxu0 %v1595
    %2183 = vmatpush1.bf16.msra.mxu0 %v1594
    %2184 = vmatprep.subr.bf16.mxu0 %v1599
    %2185 = vmatpush1.bf16.msra.mxu0 %v1598
    %2186 = vmatprep.subr.bf16.mxu0 %v1603
    %2187 = vmatpush1.bf16.msra.mxu0 %v1602
    %2188 = vmatprep.subr.bf16.mxu0 %v1607
    %2189 = vmatpush1.bf16.msra.mxu0 %v1606
    %2190 = vmatprep.subr.bf16.mxu0 %v1611
    %2191 = vmatpush1.bf16.msra.mxu0 %v1610
    %2192 = vmatprep.subr.bf16.mxu0 %v1615
    %2193 = vmatpush1.bf16.msra.mxu0 %v1614
    %2194 = vmatprep.subr.bf16.mxu0 %v1619
    %2195 = vmatpush1.bf16.msra.mxu0 %v1618
    %2196 = vmatprep.subr.bf16.mxu0 %v1623
    %2197 = vmatpush1.bf16.msra.mxu0 %v1622
    %2198 = vmatprep.subr.bf16.mxu0 %v1627
    %2199 = vmatpush1.bf16.msra.mxu0 %v1626
    %2200 = vmatprep.subr.bf16.mxu0 %v1631
    %2201 = vmatpush1.bf16.msra.mxu0 %v1630
    %2202 = vmatprep.subr.bf16.mxu0 %v1635
    %2203 = vmatpush1.bf16.msra.mxu0 %v1634
    %2204 = vmatprep.subr.bf16.mxu0 %v1639
    %2205 = vmatpush1.bf16.msra.mxu0 %v1638
    %2206 = vmatprep.subr.bf16.mxu0 %v1643
    %2207 = vmatpush1.bf16.msra.mxu0 %v1642
    %2208 = vmatprep.mubr.bf16.mxu0 %v147
    %2209 = vmatmul.mubr.bf16.gmra.mrb[0].mxu0 %v146
    %v2210 = vpop.f32.mrb[0].mxu0
    %v2211 = vadd.f32 %v2170, %v2210
    %v2212 = vpop.f32.mrb[0].mxu0
    %v2213 = vadd.f32 %v2172, %v2212
    %v2214 = vpop.f32.mrb[0].mxu0
    %v2215 = vpop.f32.mrb[0].mxu0
    %2216 = vdwg.mxu0
    %2217 = vmatprep.subr.bf16.mxu0 %v1647
    %2218 = vmatpush1.bf16.msra.mxu0 %v1646
    %2219 = vmatprep.subr.bf16.mxu0 %v1651
    %2220 = vmatpush1.bf16.msra.mxu0 %v1650
    %2221 = vmatprep.subr.bf16.mxu0 %v1655
    %2222 = vmatpush1.bf16.msra.mxu0 %v1654
    %2223 = vmatprep.subr.bf16.mxu0 %v1659
    %2224 = vmatpush1.bf16.msra.mxu0 %v1658
    %2225 = vmatprep.subr.bf16.mxu0 %v1663
    %2226 = vmatpush1.bf16.msra.mxu0 %v1662
    %2227 = vmatprep.subr.bf16.mxu0 %v1667
    %2228 = vmatpush1.bf16.msra.mxu0 %v1666
    %2229 = vmatprep.subr.bf16.mxu0 %v1671
    %2230 = vmatpush1.bf16.msra.mxu0 %v1670
    %2231 = vmatprep.subr.bf16.mxu0 %v1675
    %2232 = vmatpush1.bf16.msra.mxu0 %v1674
    %2233 = vmatprep.subr.bf16.mxu0 %v1679
    %2234 = vmatpush1.bf16.msra.mxu0 %v1678
    %2235 = vmatprep.subr.bf16.mxu0 %v1683
    %2236 = vmatpush1.bf16.msra.mxu0 %v1682
    %2237 = vmatprep.subr.bf16.mxu0 %v1687
    %2238 = vmatpush1.bf16.msra.mxu0 %v1686
    %2239 = vmatprep.subr.bf16.mxu0 %v1691
    %2240 = vmatpush1.bf16.msra.mxu0 %v1690
    %2241 = vmatprep.subr.bf16.mxu0 %v1695
    %2242 = vmatpush1.bf16.msra.mxu0 %v1694
    %2243 = vmatprep.subr.bf16.mxu0 %v1699
    %2244 = vmatpush1.bf16.msra.mxu0 %v1698
    %2245 = vmatprep.subr.bf16.mxu0 %v1703
    %2246 = vmatpush1.bf16.msra.mxu0 %v1702
    %2247 = vmatprep.subr.bf16.mxu0 %v1707
    %2248 = vmatpush1.bf16.msra.mxu0 %v1706
    %2249 = vmatprep.mubr.bf16.mxu0 %v149
    %2250 = vmatmul.mubr.bf16.gmra.mrb[0].mxu0 %v148
    %v2251 = vpop.f32.mrb[0].mxu0
    %v2252 = vadd.f32 %v2211, %v2251
    %v2253 = vpop.f32.mrb[0].mxu0
    %v2254 = vadd.f32 %v2213, %v2253
    %v2255 = vpop.f32.mrb[0].mxu0
    %v2256 = vpop.f32.mrb[0].mxu0
    %2257 = vdwg.mxu0
    %2258 = vmatprep.subr.bf16.mxu0 %v1711
    %2259 = vmatpush1.bf16.msra.mxu0 %v1710
    %2260 = vmatprep.subr.bf16.mxu0 %v1715
    %2261 = vmatpush1.bf16.msra.mxu0 %v1714
    %2262 = vmatprep.subr.bf16.mxu0 %v1719
    %2263 = vmatpush1.bf16.msra.mxu0 %v1718
    %2264 = vmatprep.subr.bf16.mxu0 %v1723
    %2265 = vmatpush1.bf16.msra.mxu0 %v1722
    %2266 = vmatprep.subr.bf16.mxu0 %v1727
    %2267 = vmatpush1.bf16.msra.mxu0 %v1726
    %2268 = vmatprep.subr.bf16.mxu0 %v1731
    %2269 = vmatpush1.bf16.msra.mxu0 %v1730
    %2270 = vmatprep.subr.bf16.mxu0 %v1735
    %2271 = vmatpush1.bf16.msra.mxu0 %v1734
    %2272 = vmatprep.subr.bf16.mxu0 %v1739
    %2273 = vmatpush1.bf16.msra.mxu0 %v1738
    %2274 = vmatprep.subr.bf16.mxu0 %v1743
    %2275 = vmatpush1.bf16.msra.mxu0 %v1742
    %2276 = vmatprep.subr.bf16.mxu0 %v1747
    %2277 = vmatpush1.bf16.msra.mxu0 %v1746
    %2278 = vmatprep.subr.bf16.mxu0 %v1751
    %2279 = vmatpush1.bf16.msra.mxu0 %v1750
    %2280 = vmatprep.subr.bf16.mxu0 %v1755
    %2281 = vmatpush1.bf16.msra.mxu0 %v1754
    %2282 = vmatprep.subr.bf16.mxu0 %v1759
    %2283 = vmatpush1.bf16.msra.mxu0 %v1758
    %2284 = vmatprep.subr.bf16.mxu0 %v1763
    %2285 = vmatpush1.bf16.msra.mxu0 %v1762
    %2286 = vmatprep.subr.bf16.mxu0 %v1767
    %2287 = vmatpush1.bf16.msra.mxu0 %v1766
    %2288 = vmatprep.subr.bf16.mxu0 %v1771
    %2289 = vmatpush1.bf16.msra.mxu0 %v1770
    %2290 = vmatprep.mubr.bf16.mxu0 %v151
    %2291 = vmatmul.mubr.bf16.gmra.mrb[0].mxu0 %v150
    %v2292 = vpop.f32.mrb[0].mxu0
    %v2293 = vadd.f32 %v2252, %v2292
    %v2294 = vpop.f32.mrb[0].mxu0
    %v2295 = vadd.f32 %v2254, %v2294
    %v2296 = vpop.f32.mrb[0].mxu0
    %v2297 = vpop.f32.mrb[0].mxu0
    %2298 = vdwg.mxu0
    %2299 = vmatprep.subr.bf16.mxu0 %v1457
    %2300 = vmatpush1.bf16.msra.mxu0 %v1456
    %2301 = vmatprep.subr.bf16.mxu0 %v1461
    %2302 = vmatpush1.bf16.msra.mxu0 %v1460
    %2303 = vmatprep.subr.bf16.mxu0 %v1465
    %2304 = vmatpush1.bf16.msra.mxu0 %v1464
    %2305 = vmatprep.subr.bf16.mxu0 %v1469
    %2306 = vmatpush1.bf16.msra.mxu0 %v1468
    %2307 = vmatprep.subr.bf16.mxu0 %v1473
    %2308 = vmatpush1.bf16.msra.mxu0 %v1472
    %2309 = vmatprep.subr.bf16.mxu0 %v1477
    %2310 = vmatpush1.bf16.msra.mxu0 %v1476
    %2311 = vmatprep.subr.bf16.mxu0 %v1481
    %2312 = vmatpush1.bf16.msra.mxu0 %v1480
    %2313 = vmatprep.subr.bf16.mxu0 %v1485
    %2314 = vmatpush1.bf16.msra.mxu0 %v1484
    %2315 = vmatprep.subr.bf16.mxu0 %v1489
    %2316 = vmatpush1.bf16.msra.mxu0 %v1488
    %2317 = vmatprep.subr.bf16.mxu0 %v1493
    %2318 = vmatpush1.bf16.msra.mxu0 %v1492
    %2319 = vmatprep.subr.bf16.mxu0 %v1497
    %2320 = vmatpush1.bf16.msra.mxu0 %v1496
    %2321 = vmatprep.subr.bf16.mxu0 %v1501
    %2322 = vmatpush1.bf16.msra.mxu0 %v1500
    %2323 = vmatprep.subr.bf16.mxu0 %v1505
    %2324 = vmatpush1.bf16.msra.mxu0 %v1504
    %2325 = vmatprep.subr.bf16.mxu0 %v1509
    %2326 = vmatpush1.bf16.msra.mxu0 %v1508
    %2327 = vmatprep.subr.bf16.mxu0 %v1513
    %2328 = vmatpush1.bf16.msra.mxu0 %v1512
    %2329 = vmatprep.subr.bf16.mxu0 %v1517
    %2330 = vmatpush1.bf16.msra.mxu0 %v1516
    %2331 = vmatprep.mubr.bf16.mxu0 %v143
    %2332 = vmatmul.mubr.bf16.gmra.mrb[0].mxu0 %v142
    %v2333 = vpop.f32.mrb[0].mxu0
    %v2334 = vadd.f32 %v485, %v2333
    %v2335 = vpop.f32.mrb[0].mxu0
    %v2336 = vadd.f32 %v489, %v2335
    %v2337 = vpop.f32.mrb[0].mxu0
    %v2338 = vpop.f32.mrb[0].mxu0
    %2339 = vdwg.mxu0
    %2340 = vmatprep.subr.bf16.mxu0 %v1521
    %2341 = vmatpush1.bf16.msra.mxu0 %v1520
    %2342 = vmatprep.subr.bf16.mxu0 %v1525
    %2343 = vmatpush1.bf16.msra.mxu0 %v1524
    %2344 = vmatprep.subr.bf16.mxu0 %v1529
    %2345 = vmatpush1.bf16.msra.mxu0 %v1528
    %2346 = vmatprep.subr.bf16.mxu0 %v1533
    %2347 = vmatpush1.bf16.msra.mxu0 %v1532
    %2348 = vmatprep.subr.bf16.mxu0 %v1537
    %2349 = vmatpush1.bf16.msra.mxu0 %v1536
    %2350 = vmatprep.subr.bf16.mxu0 %v1541
    %2351 = vmatpush1.bf16.msra.mxu0 %v1540
    %2352 = vmatprep.subr.bf16.mxu0 %v1545
    %2353 = vmatpush1.bf16.msra.mxu0 %v1544
    %2354 = vmatprep.subr.bf16.mxu0 %v1549
    %2355 = vmatpush1.bf16.msra.mxu0 %v1548
    %2356 = vmatprep.subr.bf16.mxu0 %v1553
    %2357 = vmatpush1.bf16.msra.mxu0 %v1552
    %2358 = vmatprep.subr.bf16.mxu0 %v1557
    %2359 = vmatpush1.bf16.msra.mxu0 %v1556
    %2360 = vmatprep.subr.bf16.mxu0 %v1561
    %2361 = vmatpush1.bf16.msra.mxu0 %v1560
    %2362 = vmatprep.subr.bf16.mxu0 %v1565
    %2363 = vmatpush1.bf16.msra.mxu0 %v1564
    %2364 = vmatprep.subr.bf16.mxu0 %v1569
    %2365 = vmatpush1.bf16.msra.mxu0 %v1568
    %2366 = vmatprep.subr.bf16.mxu0 %v1573
    %2367 = vmatpush1.bf16.msra.mxu0 %v1572
    %2368 = vmatprep.subr.bf16.mxu0 %v1577
    %2369 = vmatpush1.bf16.msra.mxu0 %v1576
    %2370 = vmatprep.subr.bf16.mxu0 %v1581
    %2371 = vmatpush1.bf16.msra.mxu0 %v1580
    %2372 = vmatprep.mubr.bf16.mxu0 %v145
    %2373 = vmatmul.mubr.bf16.gmra.mrb[0].mxu0 %v144
    %v2374 = vpop.f32.mrb[0].mxu0
    %v2375 = vadd.f32 %v2334, %v2374
    %v2376 = vpop.f32.mrb[0].mxu0
    %v2377 = vadd.f32 %v2336, %v2376
    %v2378 = vpop.f32.mrb[0].mxu0
    %v2379 = vpop.f32.mrb[0].mxu0
    %2380 = vdwg.mxu0
    %2381 = vmatprep.subr.bf16.mxu0 %v1585
    %2382 = vmatpush1.bf16.msra.mxu0 %v1584
    %2383 = vmatprep.subr.bf16.mxu0 %v1589
    %2384 = vmatpush1.bf16.msra.mxu0 %v1588
    %2385 = vmatprep.subr.bf16.mxu0 %v1593
    %2386 = vmatpush1.bf16.msra.mxu0 %v1592
    %2387 = vmatprep.subr.bf16.mxu0 %v1597
    %2388 = vmatpush1.bf16.msra.mxu0 %v1596
    %2389 = vmatprep.subr.bf16.mxu0 %v1601
    %2390 = vmatpush1.bf16.msra.mxu0 %v1600
    %2391 = vmatprep.subr.bf16.mxu0 %v1605
    %2392 = vmatpush1.bf16.msra.mxu0 %v1604
    %2393 = vmatprep.subr.bf16.mxu0 %v1609
    %2394 = vmatpush1.bf16.msra.mxu0 %v1608
    %2395 = vmatprep.subr.bf16.mxu0 %v1613
    %2396 = vmatpush1.bf16.msra.mxu0 %v1612
    %2397 = vmatprep.subr.bf16.mxu0 %v1617
    %2398 = vmatpush1.bf16.msra.mxu0 %v1616
    %2399 = vmatprep.subr.bf16.mxu0 %v1621
    %2400 = vmatpush1.bf16.msra.mxu0 %v1620
    %2401 = vmatprep.subr.bf16.mxu0 %v1625
    %2402 = vmatpush1.bf16.msra.mxu0 %v1624
    %2403 = vmatprep.subr.bf16.mxu0 %v1629
    %2404 = vmatpush1.bf16.msra.mxu0 %v1628
    %2405 = vmatprep.subr.bf16.mxu0 %v1633
    %2406 = vmatpush1.bf16.msra.mxu0 %v1632
    %2407 = vmatprep.subr.bf16.mxu0 %v1637
    %2408 = vmatpush1.bf16.msra.mxu0 %v1636
    %2409 = vmatprep.subr.bf16.mxu0 %v1641
    %2410 = vmatpush1.bf16.msra.mxu0 %v1640
    %2411 = vmatprep.subr.bf16.mxu0 %v1645
    %2412 = vmatpush1.bf16.msra.mxu0 %v1644
    %2413 = vmatprep.mubr.bf16.mxu0 %v147
    %2414 = vmatmul.mubr.bf16.gmra.mrb[0].mxu0 %v146
    %v2415 = vpop.f32.mrb[0].mxu0
    %v2416 = vadd.f32 %v2375, %v2415
    %v2417 = vpop.f32.mrb[0].mxu0
    %v2418 = vadd.f32 %v2377, %v2417
    %v2419 = vpop.f32.mrb[0].mxu0
    %v2420 = vpop.f32.mrb[0].mxu0
    %2421 = vdwg.mxu0
    %2422 = vmatprep.subr.bf16.mxu0 %v1649
    %2423 = vmatpush1.bf16.msra.mxu0 %v1648
    %2424 = vmatprep.subr.bf16.mxu0 %v1653
    %2425 = vmatpush1.bf16.msra.mxu0 %v1652
    %2426 = vmatprep.subr.bf16.mxu0 %v1657
    %2427 = vmatpush1.bf16.msra.mxu0 %v1656
    %2428 = vmatprep.subr.bf16.mxu0 %v1661
    %2429 = vmatpush1.bf16.msra.mxu0 %v1660
    %2430 = vmatprep.subr.bf16.mxu0 %v1665
    %2431 = vmatpush1.bf16.msra.mxu0 %v1664
    %2432 = vmatprep.subr.bf16.mxu0 %v1669
    %2433 = vmatpush1.bf16.msra.mxu0 %v1668
    %2434 = vmatprep.subr.bf16.mxu0 %v1673
    %2435 = vmatpush1.bf16.msra.mxu0 %v1672
    %2436 = vmatprep.subr.bf16.mxu0 %v1677
    %2437 = vmatpush1.bf16.msra.mxu0 %v1676
    %2438 = vmatprep.subr.bf16.mxu0 %v1681
    %2439 = vmatpush1.bf16.msra.mxu0 %v1680
    %2440 = vmatprep.subr.bf16.mxu0 %v1685
    %2441 = vmatpush1.bf16.msra.mxu0 %v1684
    %2442 = vmatprep.subr.bf16.mxu0 %v1689
    %2443 = vmatpush1.bf16.msra.mxu0 %v1688
    %2444 = vmatprep.subr.bf16.mxu0 %v1693
    %2445 = vmatpush1.bf16.msra.mxu0 %v1692
    %2446 = vmatprep.subr.bf16.mxu0 %v1697
    %2447 = vmatpush1.bf16.msra.mxu0 %v1696
    %2448 = vmatprep.subr.bf16.mxu0 %v1701
    %2449 = vmatpush1.bf16.msra.mxu0 %v1700
    %2450 = vmatprep.subr.bf16.mxu0 %v1705
    %2451 = vmatpush1.bf16.msra.mxu0 %v1704
    %2452 = vmatprep.subr.bf16.mxu0 %v1709
    %2453 = vmatpush1.bf16.msra.mxu0 %v1708
    %2454 = vmatprep.mubr.bf16.mxu0 %v149
    %2455 = vmatmul.mubr.bf16.gmra.mrb[0].mxu0 %v148
    %v2456 = vpop.f32.mrb[0].mxu0
    %v2457 = vadd.f32 %v2416, %v2456
    %v2458 = vpop.f32.mrb[0].mxu0
    %v2459 = vadd.f32 %v2418, %v2458
    %v2460 = vpop.f32.mrb[0].mxu0
    %v2461 = vpop.f32.mrb[0].mxu0
    %2462 = vdwg.mxu0
    %2463 = vmatprep.subr.bf16.mxu0 %v1713
    %2464 = vmatpush1.bf16.msra.mxu0 %v1712
    %2465 = vmatprep.subr.bf16.mxu0 %v1717
    %2466 = vmatpush1.bf16.msra.mxu0 %v1716
    %2467 = vmatprep.subr.bf16.mxu0 %v1721
    %2468 = vmatpush1.bf16.msra.mxu0 %v1720
    %2469 = vmatprep.subr.bf16.mxu0 %v1725
    %2470 = vmatpush1.bf16.msra.mxu0 %v1724
    %2471 = vmatprep.subr.bf16.mxu0 %v1729
    %2472 = vmatpush1.bf16.msra.mxu0 %v1728
    %2473 = vmatprep.subr.bf16.mxu0 %v1733
    %2474 = vmatpush1.bf16.msra.mxu0 %v1732
    %2475 = vmatprep.subr.bf16.mxu0 %v1737
    %2476 = vmatpush1.bf16.msra.mxu0 %v1736
    %2477 = vmatprep.subr.bf16.mxu0 %v1741
    %2478 = vmatpush1.bf16.msra.mxu0 %v1740
    %2479 = vmatprep.subr.bf16.mxu0 %v1745
    %2480 = vmatpush1.bf16.msra.mxu0 %v1744
    %2481 = vmatprep.subr.bf16.mxu0 %v1749
    %2482 = vmatpush1.bf16.msra.mxu0 %v1748
    %2483 = vmatprep.subr.bf16.mxu0 %v1753
    %2484 = vmatpush1.bf16.msra.mxu0 %v1752
    %2485 = vmatprep.subr.bf16.mxu0 %v1757
    %2486 = vmatpush1.bf16.msra.mxu0 %v1756
    %2487 = vmatprep.subr.bf16.mxu0 %v1761
    %2488 = vmatpush1.bf16.msra.mxu0 %v1760
    %2489 = vmatprep.subr.bf16.mxu0 %v1765
    %2490 = vmatpush1.bf16.msra.mxu0 %v1764
    %2491 = vmatprep.subr.bf16.mxu0 %v1769
    %2492 = vmatpush1.bf16.msra.mxu0 %v1768
    %2493 = vmatprep.subr.bf16.mxu0 %v1773
    %2494 = vmatpush1.bf16.msra.mxu0 %v1772
    %2495 = vmatprep.mubr.bf16.mxu0 %v151
    %2496 = vmatmul.mubr.bf16.gmra.mrb[0].mxu0 %v150
    %v2497 = vpop.f32.mrb[0].mxu0
    %v2498 = vadd.f32 %v2457, %v2497
    %v2499 = vpop.f32.mrb[0].mxu0
    %v2500 = vadd.f32 %v2459, %v2499
    %v2501 = vpop.f32.mrb[0].mxu0
    %v2502 = vpop.f32.mrb[0].mxu0
    %2503 = vdwg.mxu0
    %v2504 = vmax.f32 %v2293, 0.0
    %v2505 = vmax.f32 %v2295, 0.0
    %v2506 = vmax.f32 %v2498, 0.0
    %v2507 = vmax.f32 %v2500, 0.0
    %v2508 = vadd.f32 %v2504, %v2505
    %v2509 = vadd.f32 %v2508, %v2506
    %v2510 = vadd.f32 %v2509, %v2507
    %2511 = vadd.xlane.f32.xlu0 %v2510
    %v2512 = vpop.xlane.xlu0 %2511
    %v2513 = vrcp.pop 512.0
    %v2514 = vmul.f32 %v2512, %v2513
    %v2515 = vmul.f32 %v2504, %v2504
    %v2516 = vmul.f32 %v2505, %v2505
    %v2517 = vmul.f32 %v2506, %v2506
    %v2518 = vmul.f32 %v2507, %v2507
    %v2519 = vadd.f32 %v2515, %v2516
    %v2520 = vadd.f32 %v2519, %v2517
    %v2521 = vadd.f32 %v2520, %v2518
    %2522 = vadd.xlane.f32.xlu0 %v2521
    %v2523 = vpop.xlane.xlu0 %2522
    %v2524 = vmul.f32 %v2523, %v2513
    %v2525 = vmul.f32 %v2514, %v2514
    %v2526 = vsub.f32 %v2524, %v2525
    %v2527 = vmax.f32 %v2526, 0.0
    %v2528 = vsub.f32 %v2504, %v2514
    %v2529 = vsub.f32 %v2505, %v2514
    %v2530 = vsub.f32 %v2506, %v2514
    %v2531 = vsub.f32 %v2507, %v2514
    %v2532 = vadd.f32 %v2527, 1e-05
    %v2533 = vrsqrt.pop %v2532
    %v2534 = vmul.f32 %v2528, %v2533
    %v2535 = vmul.f32 %v2529, %v2533
    %v2536 = vmul.f32 %v2530, %v2533
    %v2537 = vmul.f32 %v2531, %v2533
    %v2538 = vld [vmem:[#allocation9] sm:$0xf]
    %v2540 = vlaneseq
    %v2541 = vshrl.u32 %v2540, 7
    %v2542 = vsub.s32 0, %v2541
    %v2543 = vrot.slane %v2538, %v2542
    %v2544 = vlaneseq
    %v2545 = vshrl.u32 %v2544, 7
    %v2546 = vsub.s32 1, %v2545
    %v2547 = vrot.slane %v2538, %v2546
    %v2548 = vlaneseq
    %v2549 = vshrl.u32 %v2548, 7
    %v2550 = vsub.s32 2, %v2549
    %v2551 = vrot.slane %v2538, %v2550
    %v2552 = vlaneseq
    %v2553 = vshrl.u32 %v2552, 7
    %v2554 = vsub.s32 3, %v2553
    %v2555 = vrot.slane %v2538, %v2554
    %v2560 = vmul.f32 %v2534, %v2543
    %v2561 = vmul.f32 %v2535, %v2547
    %v2562 = vmul.f32 %v2536, %v2551
    %v2563 = vmul.f32 %v2537, %v2555
    %v2564 = vld [vmem:[#allocation11] sm:$0xf]
    %v2566 = vlaneseq
    %v2567 = vshrl.u32 %v2566, 7
    %v2568 = vsub.s32 0, %v2567
    %v2569 = vrot.slane %v2564, %v2568
    %v2570 = vlaneseq
    %v2571 = vshrl.u32 %v2570, 7
    %v2572 = vsub.s32 1, %v2571
    %v2573 = vrot.slane %v2564, %v2572
    %v2574 = vlaneseq
    %v2575 = vshrl.u32 %v2574, 7
    %v2576 = vsub.s32 2, %v2575
    %v2577 = vrot.slane %v2564, %v2576
    %v2578 = vlaneseq
    %v2579 = vshrl.u32 %v2578, 7
    %v2580 = vsub.s32 3, %v2579
    %v2581 = vrot.slane %v2564, %v2580
    %v2586 = vadd.f32 %v2560, %v2569
    %v2587 = vadd.f32 %v2561, %v2573
    %v2588 = vadd.f32 %v2562, %v2577
    %v2589 = vadd.f32 %v2563, %v2581
    %v2590 = vpack.c.bf16 %v2586, %v2586
    %v2591 = vpack.c.bf16 %v2587, %v2587
    %v2592 = vpack.c.bf16 %v2588, %v2588
    %v2593 = vpack.c.bf16 %v2589, %v2589
    %v2594 = vld [vmem:[#allocation12] sm:$0xff]
    %v2595 = vld [vmem:[#allocation12 + $0x8] sm:$0xff]
    %v2596 = vld [vmem:[#allocation12 + $0x10] sm:$0xff]
    %v2597 = vld [vmem:[#allocation12 + $0x18] sm:$0xff]
    %v2598 = vld [vmem:[#allocation12 + $0x20] sm:$0xff]
    %v2599 = vld [vmem:[#allocation12 + $0x28] sm:$0xff]
    %v2600 = vld [vmem:[#allocation12 + $0x30] sm:$0xff]
    %v2601 = vld [vmem:[#allocation12 + $0x38] sm:$0xff]
    %v2602 = vld [vmem:[#allocation12 + $0x40] sm:$0xff]
    %v2603 = vld [vmem:[#allocation12 + $0x48] sm:$0xff]
    %v2604 = vld [vmem:[#allocation12 + $0x50] sm:$0xff]
    %v2605 = vld [vmem:[#allocation12 + $0x58] sm:$0xff]
    %v2606 = vld [vmem:[#allocation12 + $0x60] sm:$0xff]
    %v2607 = vld [vmem:[#allocation12 + $0x68] sm:$0xff]
    %v2608 = vld [vmem:[#allocation12 + $0x70] sm:$0xff]
    %v2609 = vld [vmem:[#allocation12 + $0x78] sm:$0xff]
    %v2610 = vld [vmem:[#allocation12 + $0x80] sm:$0xff]
    %v2611 = vld [vmem:[#allocation12 + $0x88] sm:$0xff]
    %v2612 = vld [vmem:[#allocation12 + $0x90] sm:$0xff]
    %v2613 = vld [vmem:[#allocation12 + $0x98] sm:$0xff]
    %v2614 = vld [vmem:[#allocation12 + $0xa0] sm:$0xff]
    %v2615 = vld [vmem:[#allocation12 + $0xa8] sm:$0xff]
    %v2616 = vld [vmem:[#allocation12 + $0xb0] sm:$0xff]
    %v2617 = vld [vmem:[#allocation12 + $0xb8] sm:$0xff]
    %v2618 = vld [vmem:[#allocation12 + $0xc0] sm:$0xff]
    %v2619 = vld [vmem:[#allocation12 + $0xc8] sm:$0xff]
    %v2620 = vld [vmem:[#allocation12 + $0xd0] sm:$0xff]
    %v2621 = vld [vmem:[#allocation12 + $0xd8] sm:$0xff]
    %v2622 = vld [vmem:[#allocation12 + $0xe0] sm:$0xff]
    %v2623 = vld [vmem:[#allocation12 + $0xe8] sm:$0xff]
    %v2624 = vld [vmem:[#allocation12 + $0xf0] sm:$0xff]
    %v2625 = vld [vmem:[#allocation12 + $0xf8] sm:$0xff]
    %v2626 = vld [vmem:[#allocation12 + $0x100] sm:$0xff]
    %v2627 = vld [vmem:[#allocation12 + $0x108] sm:$0xff]
    %v2628 = vld [vmem:[#allocation12 + $0x110] sm:$0xff]
    %v2629 = vld [vmem:[#allocation12 + $0x118] sm:$0xff]
    %v2630 = vld [vmem:[#allocation12 + $0x120] sm:$0xff]
    %v2631 = vld [vmem:[#allocation12 + $0x128] sm:$0xff]
    %v2632 = vld [vmem:[#allocation12 + $0x130] sm:$0xff]
    %v2633 = vld [vmem:[#allocation12 + $0x138] sm:$0xff]
    %v2634 = vld [vmem:[#allocation12 + $0x140] sm:$0xff]
    %v2635 = vld [vmem:[#allocation12 + $0x148] sm:$0xff]
    %v2636 = vld [vmem:[#allocation12 + $0x150] sm:$0xff]
    %v2637 = vld [vmem:[#allocation12 + $0x158] sm:$0xff]
    %v2638 = vld [vmem:[#allocation12 + $0x160] sm:$0xff]
    %v2639 = vld [vmem:[#allocation12 + $0x168] sm:$0xff]
    %v2640 = vld [vmem:[#allocation12 + $0x170] sm:$0xff]
    %v2641 = vld [vmem:[#allocation12 + $0x178] sm:$0xff]
    %v2642 = vld [vmem:[#allocation12 + $0x180] sm:$0xff]
    %v2643 = vld [vmem:[#allocation12 + $0x188] sm:$0xff]
    %v2644 = vld [vmem:[#allocation12 + $0x190] sm:$0xff]
    %v2645 = vld [vmem:[#allocation12 + $0x198] sm:$0xff]
    %v2646 = vld [vmem:[#allocation12 + $0x1a0] sm:$0xff]
    %v2647 = vld [vmem:[#allocation12 + $0x1a8] sm:$0xff]
    %v2648 = vld [vmem:[#allocation12 + $0x1b0] sm:$0xff]
    %v2649 = vld [vmem:[#allocation12 + $0x1b8] sm:$0xff]
    %v2650 = vld [vmem:[#allocation12 + $0x1c0] sm:$0xff]
    %v2651 = vld [vmem:[#allocation12 + $0x1c8] sm:$0xff]
    %v2652 = vld [vmem:[#allocation12 + $0x1d0] sm:$0xff]
    %v2653 = vld [vmem:[#allocation12 + $0x1d8] sm:$0xff]
    %v2654 = vld [vmem:[#allocation12 + $0x1e0] sm:$0xff]
    %v2655 = vld [vmem:[#allocation12 + $0x1e8] sm:$0xff]
    %v2656 = vld [vmem:[#allocation12 + $0x1f0] sm:$0xff]
    %v2657 = vld [vmem:[#allocation12 + $0x1f8] sm:$0xff]
    %v2658 = vld [vmem:[#allocation14] sm:$0x3]
    %v2660 = vlaneseq
    %v2661 = vshrl.u32 %v2660, 7
    %v2662 = vsub.s32 0, %v2661
    %v2663 = vrot.slane %v2658, %v2662
    %v2664 = vlaneseq
    %v2665 = vshrl.u32 %v2664, 7
    %v2666 = vsub.s32 1, %v2665
    %v2667 = vrot.slane %v2658, %v2666
    %v2734 = vunpack.c.l.b16 %v2594
    %v2735 = vunpack.c.h.b16 %v2594
    %v2736 = vunpack.c.l.b16 %v2595
    %v2737 = vunpack.c.h.b16 %v2595
    %v2738 = vunpack.c.l.b16 %v2596
    %v2739 = vunpack.c.h.b16 %v2596
    %v2740 = vunpack.c.l.b16 %v2597
    %v2741 = vunpack.c.h.b16 %v2597
    %v2742 = vunpack.c.l.b16 %v2598
    %v2743 = vunpack.c.h.b16 %v2598
    %v2744 = vunpack.c.l.b16 %v2599
    %v2745 = vunpack.c.h.b16 %v2599
    %v2746 = vunpack.c.l.b16 %v2600
    %v2747 = vunpack.c.h.b16 %v2600
    %v2748 = vunpack.c.l.b16 %v2601
    %v2749 = vunpack.c.h.b16 %v2601
    %v2750 = vunpack.c.l.b16 %v2602
    %v2751 = vunpack.c.h.b16 %v2602
    %v2752 = vunpack.c.l.b16 %v2603
    %v2753 = vunpack.c.h.b16 %v2603
    %v2754 = vunpack.c.l.b16 %v2604
    %v2755 = vunpack.c.h.b16 %v2604
    %v2756 = vunpack.c.l.b16 %v2605
    %v2757 = vunpack.c.h.b16 %v2605
    %v2758 = vunpack.c.l.b16 %v2606
    %v2759 = vunpack.c.h.b16 %v2606
    %v2760 = vunpack.c.l.b16 %v2607
    %v2761 = vunpack.c.h.b16 %v2607
    %v2762 = vunpack.c.l.b16 %v2608
    %v2763 = vunpack.c.h.b16 %v2608
    %v2764 = vunpack.c.l.b16 %v2609
    %v2765 = vunpack.c.h.b16 %v2609
    %v2766 = vunpack.c.l.b16 %v2610
    %v2767 = vunpack.c.h.b16 %v2610
    %v2768 = vunpack.c.l.b16 %v2611
    %v2769 = vunpack.c.h.b16 %v2611
    %v2770 = vunpack.c.l.b16 %v2612
    %v2771 = vunpack.c.h.b16 %v2612
    %v2772 = vunpack.c.l.b16 %v2613
    %v2773 = vunpack.c.h.b16 %v2613
    %v2774 = vunpack.c.l.b16 %v2614
    %v2775 = vunpack.c.h.b16 %v2614
    %v2776 = vunpack.c.l.b16 %v2615
    %v2777 = vunpack.c.h.b16 %v2615
    %v2778 = vunpack.c.l.b16 %v2616
    %v2779 = vunpack.c.h.b16 %v2616
    %v2780 = vunpack.c.l.b16 %v2617
    %v2781 = vunpack.c.h.b16 %v2617
    %v2782 = vunpack.c.l.b16 %v2618
    %v2783 = vunpack.c.h.b16 %v2618
    %v2784 = vunpack.c.l.b16 %v2619
    %v2785 = vunpack.c.h.b16 %v2619
    %v2786 = vunpack.c.l.b16 %v2620
    %v2787 = vunpack.c.h.b16 %v2620
    %v2788 = vunpack.c.l.b16 %v2621
    %v2789 = vunpack.c.h.b16 %v2621
    %v2790 = vunpack.c.l.b16 %v2622
    %v2791 = vunpack.c.h.b16 %v2622
    %v2792 = vunpack.c.l.b16 %v2623
    %v2793 = vunpack.c.h.b16 %v2623
    %v2794 = vunpack.c.l.b16 %v2624
    %v2795 = vunpack.c.h.b16 %v2624
    %v2796 = vunpack.c.l.b16 %v2625
    %v2797 = vunpack.c.h.b16 %v2625
    %v2798 = vunpack.c.l.b16 %v2626
    %v2799 = vunpack.c.h.b16 %v2626
    %v2800 = vunpack.c.l.b16 %v2627
    %v2801 = vunpack.c.h.b16 %v2627
    %v2802 = vunpack.c.l.b16 %v2628
    %v2803 = vunpack.c.h.b16 %v2628
    %v2804 = vunpack.c.l.b16 %v2629
    %v2805 = vunpack.c.h.b16 %v2629
    %v2806 = vunpack.c.l.b16 %v2630
    %v2807 = vunpack.c.h.b16 %v2630
    %v2808 = vunpack.c.l.b16 %v2631
    %v2809 = vunpack.c.h.b16 %v2631
    %v2810 = vunpack.c.l.b16 %v2632
    %v2811 = vunpack.c.h.b16 %v2632
    %v2812 = vunpack.c.l.b16 %v2633
    %v2813 = vunpack.c.h.b16 %v2633
    %v2814 = vunpack.c.l.b16 %v2634
    %v2815 = vunpack.c.h.b16 %v2634
    %v2816 = vunpack.c.l.b16 %v2635
    %v2817 = vunpack.c.h.b16 %v2635
    %v2818 = vunpack.c.l.b16 %v2636
    %v2819 = vunpack.c.h.b16 %v2636
    %v2820 = vunpack.c.l.b16 %v2637
    %v2821 = vunpack.c.h.b16 %v2637
    %v2822 = vunpack.c.l.b16 %v2638
    %v2823 = vunpack.c.h.b16 %v2638
    %v2824 = vunpack.c.l.b16 %v2639
    %v2825 = vunpack.c.h.b16 %v2639
    %v2826 = vunpack.c.l.b16 %v2640
    %v2827 = vunpack.c.h.b16 %v2640
    %v2828 = vunpack.c.l.b16 %v2641
    %v2829 = vunpack.c.h.b16 %v2641
    %v2830 = vunpack.c.l.b16 %v2642
    %v2831 = vunpack.c.h.b16 %v2642
    %v2832 = vunpack.c.l.b16 %v2643
    %v2833 = vunpack.c.h.b16 %v2643
    %v2834 = vunpack.c.l.b16 %v2644
    %v2835 = vunpack.c.h.b16 %v2644
    %v2836 = vunpack.c.l.b16 %v2645
    %v2837 = vunpack.c.h.b16 %v2645
    %v2838 = vunpack.c.l.b16 %v2646
    %v2839 = vunpack.c.h.b16 %v2646
    %v2840 = vunpack.c.l.b16 %v2647
    %v2841 = vunpack.c.h.b16 %v2647
    %v2842 = vunpack.c.l.b16 %v2648
    %v2843 = vunpack.c.h.b16 %v2648
    %v2844 = vunpack.c.l.b16 %v2649
    %v2845 = vunpack.c.h.b16 %v2649
    %v2846 = vunpack.c.l.b16 %v2650
    %v2847 = vunpack.c.h.b16 %v2650
    %v2848 = vunpack.c.l.b16 %v2651
    %v2849 = vunpack.c.h.b16 %v2651
    %v2850 = vunpack.c.l.b16 %v2652
    %v2851 = vunpack.c.h.b16 %v2652
    %v2852 = vunpack.c.l.b16 %v2653
    %v2853 = vunpack.c.h.b16 %v2653
    %v2854 = vunpack.c.l.b16 %v2654
    %v2855 = vunpack.c.h.b16 %v2654
    %v2856 = vunpack.c.l.b16 %v2655
    %v2857 = vunpack.c.h.b16 %v2655
    %v2858 = vunpack.c.l.b16 %v2656
    %v2859 = vunpack.c.h.b16 %v2656
    %v2860 = vunpack.c.l.b16 %v2657
    %v2861 = vunpack.c.h.b16 %v2657
    %v2862 = vpack.c.b16 %v2736, %v2734
    %v2863 = vpack.c.b16 %v2737, %v2735
    %v2864 = vpack.c.b16 %v2740, %v2738
    %v2865 = vpack.c.b16 %v2741, %v2739
    %v2866 = vpack.c.b16 %v2744, %v2742
    %v2867 = vpack.c.b16 %v2745, %v2743
    %v2868 = vpack.c.b16 %v2748, %v2746
    %v2869 = vpack.c.b16 %v2749, %v2747
    %v2870 = vpack.c.b16 %v2752, %v2750
    %v2871 = vpack.c.b16 %v2753, %v2751
    %v2872 = vpack.c.b16 %v2756, %v2754
    %v2873 = vpack.c.b16 %v2757, %v2755
    %v2874 = vpack.c.b16 %v2760, %v2758
    %v2875 = vpack.c.b16 %v2761, %v2759
    %v2876 = vpack.c.b16 %v2764, %v2762
    %v2877 = vpack.c.b16 %v2765, %v2763
    %v2878 = vpack.c.b16 %v2768, %v2766
    %v2879 = vpack.c.b16 %v2769, %v2767
    %v2880 = vpack.c.b16 %v2772, %v2770
    %v2881 = vpack.c.b16 %v2773, %v2771
    %v2882 = vpack.c.b16 %v2776, %v2774
    %v2883 = vpack.c.b16 %v2777, %v2775
    %v2884 = vpack.c.b16 %v2780, %v2778
    %v2885 = vpack.c.b16 %v2781, %v2779
    %v2886 = vpack.c.b16 %v2784, %v2782
    %v2887 = vpack.c.b16 %v2785, %v2783
    %v2888 = vpack.c.b16 %v2788, %v2786
    %v2889 = vpack.c.b16 %v2789, %v2787
    %v2890 = vpack.c.b16 %v2792, %v2790
    %v2891 = vpack.c.b16 %v2793, %v2791
    %v2892 = vpack.c.b16 %v2796, %v2794
    %v2893 = vpack.c.b16 %v2797, %v2795
    %v2894 = vpack.c.b16 %v2800, %v2798
    %v2895 = vpack.c.b16 %v2801, %v2799
    %v2896 = vpack.c.b16 %v2804, %v2802
    %v2897 = vpack.c.b16 %v2805, %v2803
    %v2898 = vpack.c.b16 %v2808, %v2806
    %v2899 = vpack.c.b16 %v2809, %v2807
    %v2900 = vpack.c.b16 %v2812, %v2810
    %v2901 = vpack.c.b16 %v2813, %v2811
    %v2902 = vpack.c.b16 %v2816, %v2814
    %v2903 = vpack.c.b16 %v2817, %v2815
    %v2904 = vpack.c.b16 %v2820, %v2818
    %v2905 = vpack.c.b16 %v2821, %v2819
    %v2906 = vpack.c.b16 %v2824, %v2822
    %v2907 = vpack.c.b16 %v2825, %v2823
    %v2908 = vpack.c.b16 %v2828, %v2826
    %v2909 = vpack.c.b16 %v2829, %v2827
    %v2910 = vpack.c.b16 %v2832, %v2830
    %v2911 = vpack.c.b16 %v2833, %v2831
    %v2912 = vpack.c.b16 %v2836, %v2834
    %v2913 = vpack.c.b16 %v2837, %v2835
    %v2914 = vpack.c.b16 %v2840, %v2838
    %v2915 = vpack.c.b16 %v2841, %v2839
    %v2916 = vpack.c.b16 %v2844, %v2842
    %v2917 = vpack.c.b16 %v2845, %v2843
    %v2918 = vpack.c.b16 %v2848, %v2846
    %v2919 = vpack.c.b16 %v2849, %v2847
    %v2920 = vpack.c.b16 %v2852, %v2850
    %v2921 = vpack.c.b16 %v2853, %v2851
    %v2922 = vpack.c.b16 %v2856, %v2854
    %v2923 = vpack.c.b16 %v2857, %v2855
    %v2924 = vpack.c.b16 %v2860, %v2858
    %v2925 = vpack.c.b16 %v2861, %v2859
    %2990 = vmatprep.subr.bf16.mxu0 %v2863
    %2991 = vmatpush1.bf16.msra.mxu0 %v2862
    %2992 = vmatprep.subr.bf16.mxu0 %v2865
    %2993 = vmatpush1.bf16.msra.mxu0 %v2864
    %2994 = vmatprep.subr.bf16.mxu0 %v2867
    %2995 = vmatpush1.bf16.msra.mxu0 %v2866
    %2996 = vmatprep.subr.bf16.mxu0 %v2869
    %2997 = vmatpush1.bf16.msra.mxu0 %v2868
    %2998 = vmatprep.subr.bf16.mxu0 %v2871
    %2999 = vmatpush1.bf16.msra.mxu0 %v2870
    %3000 = vmatprep.subr.bf16.mxu0 %v2873
    %3001 = vmatpush1.bf16.msra.mxu0 %v2872
    %3002 = vmatprep.subr.bf16.mxu0 %v2875
    %3003 = vmatpush1.bf16.msra.mxu0 %v2874
    %3004 = vmatprep.subr.bf16.mxu0 %v2877
    %3005 = vmatpush1.bf16.msra.mxu0 %v2876
    %3006 = vmatprep.subr.bf16.mxu0 %v2879
    %3007 = vmatpush1.bf16.msra.mxu0 %v2878
    %3008 = vmatprep.subr.bf16.mxu0 %v2881
    %3009 = vmatpush1.bf16.msra.mxu0 %v2880
    %3010 = vmatprep.subr.bf16.mxu0 %v2883
    %3011 = vmatpush1.bf16.msra.mxu0 %v2882
    %3012 = vmatprep.subr.bf16.mxu0 %v2885
    %3013 = vmatpush1.bf16.msra.mxu0 %v2884
    %3014 = vmatprep.subr.bf16.mxu0 %v2887
    %3015 = vmatpush1.bf16.msra.mxu0 %v2886
    %3016 = vmatprep.subr.bf16.mxu0 %v2889
    %3017 = vmatpush1.bf16.msra.mxu0 %v2888
    %3018 = vmatprep.subr.bf16.mxu0 %v2891
    %3019 = vmatpush1.bf16.msra.mxu0 %v2890
    %3020 = vmatprep.subr.bf16.mxu0 %v2893
    %3021 = vmatpush1.bf16.msra.mxu0 %v2892
    %3022 = vmatprep.mubr.bf16.mxu0 %v2591
    %3023 = vmatmul.mubr.bf16.gmra.mrb[0].mxu0 %v2590
    %v3024 = vpop.f32.mrb[0].mxu0
    %v3025 = vadd.f32 %v2663, %v3024
    %v3026 = vpop.f32.mrb[0].mxu0
    %v3027 = vadd.f32 %v2667, %v3026
    %v3028 = vpop.f32.mrb[0].mxu0
    %v3029 = vpop.f32.mrb[0].mxu0
    %3030 = vdwg.mxu0
    %3031 = vmatprep.subr.bf16.mxu0 %v2895
    %3032 = vmatpush1.bf16.msra.mxu0 %v2894
    %3033 = vmatprep.subr.bf16.mxu0 %v2897
    %3034 = vmatpush1.bf16.msra.mxu0 %v2896
    %3035 = vmatprep.subr.bf16.mxu0 %v2899
    %3036 = vmatpush1.bf16.msra.mxu0 %v2898
    %3037 = vmatprep.subr.bf16.mxu0 %v2901
    %3038 = vmatpush1.bf16.msra.mxu0 %v2900
    %3039 = vmatprep.subr.bf16.mxu0 %v2903
    %3040 = vmatpush1.bf16.msra.mxu0 %v2902
    %3041 = vmatprep.subr.bf16.mxu0 %v2905
    %3042 = vmatpush1.bf16.msra.mxu0 %v2904
    %3043 = vmatprep.subr.bf16.mxu0 %v2907
    %3044 = vmatpush1.bf16.msra.mxu0 %v2906
    %3045 = vmatprep.subr.bf16.mxu0 %v2909
    %3046 = vmatpush1.bf16.msra.mxu0 %v2908
    %3047 = vmatprep.subr.bf16.mxu0 %v2911
    %3048 = vmatpush1.bf16.msra.mxu0 %v2910
    %3049 = vmatprep.subr.bf16.mxu0 %v2913
    %3050 = vmatpush1.bf16.msra.mxu0 %v2912
    %3051 = vmatprep.subr.bf16.mxu0 %v2915
    %3052 = vmatpush1.bf16.msra.mxu0 %v2914
    %3053 = vmatprep.subr.bf16.mxu0 %v2917
    %3054 = vmatpush1.bf16.msra.mxu0 %v2916
    %3055 = vmatprep.subr.bf16.mxu0 %v2919
    %3056 = vmatpush1.bf16.msra.mxu0 %v2918
    %3057 = vmatprep.subr.bf16.mxu0 %v2921
    %3058 = vmatpush1.bf16.msra.mxu0 %v2920
    %3059 = vmatprep.subr.bf16.mxu0 %v2923
    %3060 = vmatpush1.bf16.msra.mxu0 %v2922
    %3061 = vmatprep.subr.bf16.mxu0 %v2925
    %3062 = vmatpush1.bf16.msra.mxu0 %v2924
    %3063 = vmatprep.mubr.bf16.mxu0 %v2593
    %3064 = vmatmul.mubr.bf16.gmra.mrb[0].mxu0 %v2592
    %v3065 = vpop.f32.mrb[0].mxu0
    %v3066 = vadd.f32 %v3025, %v3065
    %v3067 = vpop.f32.mrb[0].mxu0
    %v3068 = vadd.f32 %v3027, %v3067
    %v3069 = vpop.f32.mrb[0].mxu0
    %v3070 = vpop.f32.mrb[0].mxu0
    %3071 = vdwg.mxu0
    %v3072 = vmax.f32 %v3066, 0.0
    %v3073 = vmax.f32 %v3068, 0.0
    %v3074 = vld [vmem:[#allocation15] sm:$0x3]
    %v3076 = vlaneseq
    %v3077 = vshrl.u32 %v3076, 7
    %v3078 = vsub.s32 0, %v3077
    %v3079 = vrot.slane %v3074, %v3078
    %v3080 = vlaneseq
    %v3081 = vshrl.u32 %v3080, 7
    %v3082 = vsub.s32 1, %v3081
    %v3083 = vrot.slane %v3074, %v3082
    %v3086 = vmul.f32 %v3072, %v3079
    %v3087 = vmul.f32 %v3073, %v3083
    %v3088 = vadd.f32 %v3086, %v3087
    %3089 = vadd.xlane.f32.xlu0 %v3088
    %v3090 = vpop.xlane.xlu0 %3089
    %v3091 = vld [vmem:[#allocation2] sm:$0x1]
    %3093 = vset.pattern.permute.xlu0 0
    %3094 = vperm.xlu0 %3093, %v3091
    %v3095 = vpop.permute.xlu0 %3094
    %v3097 = vlaneseq
    %v3098 = vshrl.u32 %v3097, 7
    %v3099 = vsub.s32 0, %v3098
    %v3100 = vrot.slane %v3095, %v3099
    %v3101 = vadd.f32 %v3090, %v3100
    %v3103 = vlaneseq
    %v3104 = vand.u32 %v3103, 127
    %v3105 = vlaneseq
    %v3106 = vshrl.u32 %v3105, 7
    %v3107 = vsub.s32 %v3104, %v3106
    %v3108 = vrot.slane %v3101, %v3107
    %vm3110 = vcmask 57344
    %3111 = vst.msk [vmem:[#allocation17] sm:$0x1] %vm3110, %v3108
    // Predicated region
    $region70: #{tpu_custom_call.1} parent=1 // pred_check
      _
    $region71: #{tpu_custom_call.1} parent=1 // pred_check_branch
      %3113 = sbr.rel (0) target = $region73
    $region72: #{tpu_custom_call.1} parent=1 // pred_region
      %s3115 = ssub.s32 16, 16
      %3116 = vsyncadd [#allocation5], %s3115
      %s3118 = sshll.u32 [#allocation17], 4
      %s3119 = int_to_ptr.vmem [resolvable:$true] %s3118
      %3121 = dma.vmem_to_hbm [thread:$0]  %s3119, 16, %s9, [#allocation5]
    $region73: #{tpu_custom_call.1} parent=1 // pred_fallthru
      _
    // Predicated region
    $region74: #{tpu_custom_call.1} parent=1 // pred_check
      _
    $region75: #{tpu_custom_call.1} parent=1 // pred_check_branch
      %3123 = sbr.rel (0) target = $region77
    $region76: #{tpu_custom_call.1} parent=1 // pred_region
      %3124 = dma.done [#allocation5], 16
    $region77: #{tpu_custom_call.1} parent=1 // pred_fallthru
      _
    %3125 = vsyncpa [#allocation4], 1
    %3126 = vsyncpa [#allocation7], 1
    %3127 = vsyncpa [#allocation10], 1
    %3128 = vsyncpa [#allocation13], 1
    %3129 = vsyncpa [#allocation16], 1
    %3130 = vsyncpa [#allocation5], 1

</llo_original>
